<compile_context>
chip_gen: v7x
topology: tpu7x:2x2x1
jax: 0.10.0
libtpu: 0.0.40
codegen_flags: <defaults>
</compile_context>

<pallas_src>
import jax
import jax.numpy as jnp
from jax.experimental import pallas as pl
from jax.experimental.pallas import tpu as pltpu

# ----------------------------- model dimensions -----------------------------
INPUT_DIM = 32          # input_dim
LATENT_DIM = 20         # latent_dim
X_DIM = 32              # x_dim (reconstruction width)
H1, H2 = 512, 256       # encoder hidden sizes (decoder mirrors them)
MU_LV = 2 * LATENT_DIM  # packed mu|logvar width
LN_EPS = 1e-5           # nn.LayerNorm default eps
NEG_SLOPE = 0.01        # nn.LeakyReLU default negative_slope


def _leaky_relu(x):
    return jnp.where(x > 0, x, NEG_SLOPE * x)


# --------------------------------- kernel ---------------------------------
def vae_kernel(
    x_ref, eps_ref,
    w1_ref, b1_ref,          # encoder Linear(input_dim, 512)
    w2_ref, b2_ref,          # encoder Linear(512, 256)
    wmlv_ref, bmlv_ref,      # fused fc_mu|fc_logvar Linear(256, 2*latent)
    wd1_ref, bd1_ref,        # decoder Linear(latent, 256)
    g_ref, beta_ref,         # decoder LayerNorm(256) weight / bias
    wd2_ref, bd2_ref,        # decoder Linear(256, 512)
    wd3_ref, bd3_ref,        # decoder Linear(512, x_dim)
    recon_ref, mulv_ref,
):
    x = x_ref[...]

    # ---- encoder (bf16 MXU operands, f32 accumulation) ----
    h = jnp.dot(x.astype(jnp.bfloat16), w1_ref[...],
                preferred_element_type=jnp.float32) + b1_ref[...]
    h = _leaky_relu(h)                      # Dropout(0.1) -> identity (eval mode)
    h = jnp.dot(h.astype(jnp.bfloat16), w2_ref[...],
                preferred_element_type=jnp.float32) + b2_ref[...]
    h = _leaky_relu(h)                      # Dropout(0.1) -> identity (eval mode)

    # ---- fused fc_mu | fc_logvar (single matmul, packed output) ----
    mulv = jnp.dot(h.astype(jnp.bfloat16), wmlv_ref[...],
                   preferred_element_type=jnp.float32) + bmlv_ref[...]
    mu = mulv[:, :LATENT_DIM]
    logvar = mulv[:, LATENT_DIM:]

    # ---- reparameterize ----
    z = mu + eps_ref[...] * jnp.exp(0.5 * logvar)

    # ---- decoder ----
    d = jnp.dot(z.astype(jnp.bfloat16), wd1_ref[...],
                preferred_element_type=jnp.float32) + bd1_ref[...]
    d = _leaky_relu(d)

    # LayerNorm(256): single-pass stats, biased variance (matches PyTorch)
    mean = jnp.mean(d, axis=-1, keepdims=True)
    m2 = jnp.mean(d * d, axis=-1, keepdims=True)
    var = m2 - mean * mean
    d = (d - mean) * jax.lax.rsqrt(var + LN_EPS) * g_ref[...] + beta_ref[...]

    d = jnp.dot(d.astype(jnp.bfloat16), wd2_ref[...],
                preferred_element_type=jnp.float32) + bd2_ref[...]
    d = _leaky_relu(d)
    d = jnp.dot(d.astype(jnp.bfloat16), wd3_ref[...],
                preferred_element_type=jnp.float32) + bd3_ref[...]

    recon_ref[...] = jax.nn.sigmoid(d)
    mulv_ref[...] = mulv


# --------------------------------- wrapper ---------------------------------
def vae_forward(x, eps, params, *, block_m=256):
    """x: (B, INPUT_DIM) f32, eps: (B, LATENT_DIM) f32 -> (recon, mu, logvar)."""
    B = x.shape[0]
    ((w1, b1), (w2, b2), (wmu, bmu), (wlv, blv),
     (wd1, bd1), (g, beta), (wd2, bd2), (wd3, bd3)) = params

    # Fuse fc_mu / fc_logvar into one lane-denser matmul.
    wmlv = jnp.concatenate([wmu, wlv], axis=1)
    bmlv = jnp.concatenate([bmu, blv], axis=1)

    # MXU operands in bf16 (f32 accumulate in-kernel); biases / LN params stay f32.
    bf16 = jnp.bfloat16
    flat = [
        w1.astype(bf16), b1,
        w2.astype(bf16), b2,
        wmlv.astype(bf16), bmlv,
        wd1.astype(bf16), bd1,
        g, beta,
        wd2.astype(bf16), bd2,
        wd3.astype(bf16), bd3,
    ]

    # Batch tiling: tile of `tm` rows (multiple of 8), pad B up to a multiple.
    tm = min(block_m, max(8, ((B + 7) // 8) * 8))
    b_pad = ((B + tm - 1) // tm) * tm
    if b_pad != B:
        x = jnp.pad(x, ((0, b_pad - B), (0, 0)))
        eps = jnp.pad(eps, ((0, b_pad - B), (0, 0)))
    grid = (b_pad // tm,)

    def row_spec(feat):
        return pl.BlockSpec((tm, feat), lambda i: (i, 0))

    def const_spec(shape):
        return pl.BlockSpec(shape, lambda i: (0, 0))   # weights stay VMEM-resident

    in_specs = [row_spec(INPUT_DIM), row_spec(LATENT_DIM)]
    in_specs += [const_spec(p.shape) for p in flat]
    out_specs = (row_spec(X_DIM), row_spec(MU_LV))

    flops = 2 * b_pad * (INPUT_DIM * H1 + H1 * H2 + H2 * MU_LV
                         + LATENT_DIM * H2 + H2 * H1 + H1 * X_DIM)
    transcendentals = b_pad * (LATENT_DIM + 1 + X_DIM)   # exp, rsqrt, sigmoid
    bytes_accessed = (4 * b_pad * (INPUT_DIM + LATENT_DIM + X_DIM + MU_LV)
                      + sum(int(p.size) * p.dtype.itemsize for p in flat))

    recon, mulv = pl.pallas_call(
        vae_kernel,
        out_shape=(jax.ShapeDtypeStruct((b_pad, X_DIM), jnp.float32),
                   jax.ShapeDtypeStruct((b_pad, MU_LV), jnp.float32)),
        grid=grid,
        in_specs=in_specs,
        out_specs=out_specs,
        compiler_params=pltpu.CompilerParams(
            dimension_semantics=("parallel",),      # shards batch tiles on v7x megacore
            vmem_limit_bytes=32 << 20),             # right-sized for v7x's 64 MiB VMEM
        cost_estimate=pl.CostEstimate(flops=flops,
                                      transcendentals=transcendentals,
                                      bytes_accessed=bytes_accessed),
    )(x, eps, *flat)

    recon = recon[:B]
    mu = mulv[:B, :LATENT_DIM]
    logvar = mulv[:B, LATENT_DIM:]
    return recon, mu, logvar


# ------------------------- deterministic parameter init -------------------------
def _linear_params(key, fan_in, fan_out):
    # PyTorch-style Uniform(-1/sqrt(fan_in), 1/sqrt(fan_in)); weight stored (in, out).
    kw, kb = jax.random.split(key)
    bound = 1.0 / jnp.sqrt(jnp.float32(fan_in))
    w = jax.random.uniform(kw, (fan_in, fan_out), jnp.float32, -bound, bound)
    b = jax.random.uniform(kb, (1, fan_out), jnp.float32, -bound, bound)
    return w, b


def init_params(key):
    keys = jax.random.split(key, 7)
    p = []
    p.append(_linear_params(keys[0], INPUT_DIM, H1))      # encoder.0
    p.append(_linear_params(keys[1], H1, H2))             # encoder.3
    p.append(_linear_params(keys[2], H2, LATENT_DIM))     # fc_mu
    p.append(_linear_params(keys[3], H2, LATENT_DIM))     # fc_logvar
    p.append(_linear_params(keys[4], LATENT_DIM, H2))     # decoder.0
    p.append((jnp.ones((1, H2), jnp.float32),             # LayerNorm(256) weight
              jnp.zeros((1, H2), jnp.float32)))           # LayerNorm(256) bias
    p.append(_linear_params(keys[5], H2, H1))             # decoder.3
    p.append(_linear_params(keys[6], H1, X_DIM))          # decoder.5
    return p


# --------------------------------- reference ---------------------------------
def vae_reference(x, eps, params):
    ((w1, b1), (w2, b2), (wmu, bmu), (wlv, blv),
     (wd1, bd1), (g, beta), (wd2, bd2), (wd3, bd3)) = params
    h = _leaky_relu(x @ w1 + b1)
    h = _leaky_relu(h @ w2 + b2)
    mu = h @ wmu + bmu
    logvar = h @ wlv + blv
    z = mu + eps * jnp.exp(0.5 * logvar)
    d = _leaky_relu(z @ wd1 + bd1)
    mean = jnp.mean(d, axis=-1, keepdims=True)
    var = jnp.mean(jnp.square(d - mean), axis=-1, keepdims=True)
    d = (d - mean) * jax.lax.rsqrt(var + LN_EPS) * g + beta
    d = _leaky_relu(d @ wd2 + bd2)
    recon = jax.nn.sigmoid(d @ wd3 + bd3)
    return recon, mu, logvar


if __name__ == "__main__":
    key = jax.random.PRNGKey(0)
    k_param, k_x, k_eps = jax.random.split(key, 3)

    B = 8
    params = init_params(k_param)
    x = jax.random.normal(k_x, (B, INPUT_DIM), jnp.float32)
    eps = jax.random.normal(k_eps, (B, LATENT_DIM), jnp.float32)

    recon, mu, logvar = vae_forward(x, eps, params)
    jax.block_until_ready((recon, mu, logvar))

    # sanity check against plain-JAX f32 reference (kernel uses bf16 MXU operands,
    # so allow a correspondingly relaxed tolerance).
    r_ref, mu_ref, lv_ref = vae_reference(x, eps, params)
    assert recon.shape == (B, X_DIM)
    assert mu.shape == (B, LATENT_DIM) and logvar.shape == (B, LATENT_DIM)
    assert jnp.allclose(recon, r_ref, atol=2e-2, rtol=2e-2), "recon mismatch"
    assert jnp.allclose(mu, mu_ref, atol=2e-2, rtol=2e-2), "mu mismatch"
    assert jnp.allclose(logvar, lv_ref, atol=2e-2, rtol=2e-2), "logvar mismatch"

    print("KERNEL_OK")
</pallas_src>

<mosaic_0001>
module attributes {stable_mosaic.version = 11 : i64} {
  func.func @vae_kernel(%arg0: i32, %arg1: memref<8x32xf32, #tpu.memory_space<vmem>>, %arg2: memref<8x20xf32, #tpu.memory_space<vmem>>, %arg3: memref<32x512xbf16, #tpu.memory_space<vmem>>, %arg4: memref<1x512xf32, #tpu.memory_space<vmem>>, %arg5: memref<512x256xbf16, #tpu.memory_space<vmem>>, %arg6: memref<1x256xf32, #tpu.memory_space<vmem>>, %arg7: memref<256x40xbf16, #tpu.memory_space<vmem>>, %arg8: memref<1x40xf32, #tpu.memory_space<vmem>>, %arg9: memref<20x256xbf16, #tpu.memory_space<vmem>>, %arg10: memref<1x256xf32, #tpu.memory_space<vmem>>, %arg11: memref<1x256xf32, #tpu.memory_space<vmem>>, %arg12: memref<1x256xf32, #tpu.memory_space<vmem>>, %arg13: memref<256x512xbf16, #tpu.memory_space<vmem>>, %arg14: memref<1x512xf32, #tpu.memory_space<vmem>>, %arg15: memref<512x32xbf16, #tpu.memory_space<vmem>>, %arg16: memref<1x32xf32, #tpu.memory_space<vmem>>, %arg17: memref<8x32xf32, #tpu.memory_space<vmem>>, %arg18: memref<8x40xf32, #tpu.memory_space<vmem>>) attributes {dimension_semantics = [#tpu.dimension_semantics<parallel>], iteration_bounds = array<i64: 1>, scalar_prefetch = 0 : i64, scratch_operands = 0 : i64, tpu.core_type = #tpu.core_type<tc>, window_params = [{transform_indices = @transform_0, window_bounds = array<i64: 8, 32>}, {transform_indices = @transform_1, window_bounds = array<i64: 8, 20>}, {pipeline_mode = #tpu.pipeline_mode<synchronous>, transform_indices = @transform_2, window_bounds = array<i64: 32, 512>}, {pipeline_mode = #tpu.pipeline_mode<synchronous>, transform_indices = @transform_3, window_bounds = array<i64: 1, 512>}, {pipeline_mode = #tpu.pipeline_mode<synchronous>, transform_indices = @transform_4, window_bounds = array<i64: 512, 256>}, {pipeline_mode = #tpu.pipeline_mode<synchronous>, transform_indices = @transform_5, window_bounds = array<i64: 1, 256>}, {pipeline_mode = #tpu.pipeline_mode<synchronous>, transform_indices = @transform_6, window_bounds = array<i64: 256, 40>}, {pipeline_mode = #tpu.pipeline_mode<synchronous>, transform_indices = @transform_7, window_bounds = array<i64: 1, 40>}, {pipeline_mode = #tpu.pipeline_mode<synchronous>, transform_indices = @transform_8, window_bounds = array<i64: 20, 256>}, {pipeline_mode = #tpu.pipeline_mode<synchronous>, transform_indices = @transform_9, window_bounds = array<i64: 1, 256>}, {pipeline_mode = #tpu.pipeline_mode<synchronous>, transform_indices = @transform_10, window_bounds = array<i64: 1, 256>}, {pipeline_mode = #tpu.pipeline_mode<synchronous>, transform_indices = @transform_11, window_bounds = array<i64: 1, 256>}, {pipeline_mode = #tpu.pipeline_mode<synchronous>, transform_indices = @transform_12, window_bounds = array<i64: 256, 512>}, {pipeline_mode = #tpu.pipeline_mode<synchronous>, transform_indices = @transform_13, window_bounds = array<i64: 1, 512>}, {pipeline_mode = #tpu.pipeline_mode<synchronous>, transform_indices = @transform_14, window_bounds = array<i64: 512, 32>}, {pipeline_mode = #tpu.pipeline_mode<synchronous>, transform_indices = @transform_15, window_bounds = array<i64: 1, 32>}, {transform_indices = @transform_16, window_bounds = array<i64: 8, 32>}, {transform_indices = @transform_17, window_bounds = array<i64: 8, 40>}]} {
    %c0 = arith.constant 0 : index
    %c0_0 = arith.constant 0 : index
    %0 = vector.load %arg1[%c0, %c0_0] : memref<8x32xf32, #tpu.memory_space<vmem>>, vector<8x32xf32>
    %1 = arith.truncf %0 : vector<8x32xf32> to vector<8x32xbf16>
    %c0_1 = arith.constant 0 : index
    %c0_2 = arith.constant 0 : index
    %2 = vector.load %arg3[%c0_1, %c0_2] : memref<32x512xbf16, #tpu.memory_space<vmem>>, vector<32x512xbf16>
    %cst = arith.constant dense<0.000000e+00> : vector<8x512xf32>
    %3 = tpu.matmul %1, %2, %cst {dimension_numbers = #tpu.dot_dimension_numbers<[1], [0], [0], [1], [0, 0, 1, 1], [], []>} : vector<8x32xbf16>, vector<32x512xbf16>, vector<8x512xf32> -> vector<8x512xf32>
    %c0_3 = arith.constant 0 : index
    %c0_4 = arith.constant 0 : index
    %4 = vector.load %arg4[%c0_3, %c0_4] : memref<1x512xf32, #tpu.memory_space<vmem>>, vector<1x512xf32>
    %5 = vector.broadcast %4 : vector<1x512xf32> to vector<8x512xf32>
    %6 = arith.addf %3, %5 : vector<8x512xf32>
    %cst_5 = arith.constant 0.000000e+00 : f32
    %7 = vector.broadcast %cst_5 : f32 to vector<8x512xf32>
    %8 = arith.cmpf ogt, %6, %7 : vector<8x512xf32>
    %cst_6 = arith.constant 0.00999999977 : f32
    %9 = vector.broadcast %cst_6 : f32 to vector<8x512xf32>
    %10 = arith.mulf %9, %6 : vector<8x512xf32>
    %11 = arith.select %8, %6, %10 : vector<8x512xi1>, vector<8x512xf32>
    %12 = arith.truncf %11 : vector<8x512xf32> to vector<8x512xbf16>
    %c0_7 = arith.constant 0 : index
    %c0_8 = arith.constant 0 : index
    %13 = vector.load %arg5[%c0_7, %c0_8] : memref<512x256xbf16, #tpu.memory_space<vmem>>, vector<512x256xbf16>
    %cst_9 = arith.constant dense<0.000000e+00> : vector<8x256xf32>
    %14 = tpu.matmul %12, %13, %cst_9 {dimension_numbers = #tpu.dot_dimension_numbers<[1], [0], [0], [1], [0, 0, 1, 1], [], []>} : vector<8x512xbf16>, vector<512x256xbf16>, vector<8x256xf32> -> vector<8x256xf32>
    %c0_10 = arith.constant 0 : index
    %c0_11 = arith.constant 0 : index
    %15 = vector.load %arg6[%c0_10, %c0_11] : memref<1x256xf32, #tpu.memory_space<vmem>>, vector<1x256xf32>
    %16 = vector.broadcast %15 : vector<1x256xf32> to vector<8x256xf32>
    %17 = arith.addf %14, %16 : vector<8x256xf32>
    %cst_12 = arith.constant 0.000000e+00 : f32
    %18 = vector.broadcast %cst_12 : f32 to vector<8x256xf32>
    %19 = arith.cmpf ogt, %17, %18 : vector<8x256xf32>
    %cst_13 = arith.constant 0.00999999977 : f32
    %20 = vector.broadcast %cst_13 : f32 to vector<8x256xf32>
    %21 = arith.mulf %20, %17 : vector<8x256xf32>
    %22 = arith.select %19, %17, %21 : vector<8x256xi1>, vector<8x256xf32>
    %23 = arith.truncf %22 : vector<8x256xf32> to vector<8x256xbf16>
    %c0_14 = arith.constant 0 : index
    %c0_15 = arith.constant 0 : index
    %24 = vector.load %arg7[%c0_14, %c0_15] : memref<256x40xbf16, #tpu.memory_space<vmem>>, vector<256x40xbf16>
    %cst_16 = arith.constant dense<0.000000e+00> : vector<8x40xf32>
    %25 = tpu.matmul %23, %24, %cst_16 {dimension_numbers = #tpu.dot_dimension_numbers<[1], [0], [0], [1], [0, 0, 1, 1], [], []>} : vector<8x256xbf16>, vector<256x40xbf16>, vector<8x40xf32> -> vector<8x40xf32>
    %c0_17 = arith.constant 0 : index
    %c0_18 = arith.constant 0 : index
    %26 = vector.load %arg8[%c0_17, %c0_18] : memref<1x40xf32, #tpu.memory_space<vmem>>, vector<1x40xf32>
    %27 = vector.broadcast %26 : vector<1x40xf32> to vector<8x40xf32>
    %28 = arith.addf %25, %27 : vector<8x40xf32>
    %29 = vector.extract_strided_slice %28 {offsets = [0, 0], sizes = [8, 20], strides = [1, 1]} : vector<8x40xf32> to vector<8x20xf32>
    %30 = vector.extract_strided_slice %28 {offsets = [0, 20], sizes = [8, 20], strides = [1, 1]} : vector<8x40xf32> to vector<8x20xf32>
    %c0_19 = arith.constant 0 : index
    %c0_20 = arith.constant 0 : index
    %31 = vector.load %arg2[%c0_19, %c0_20] : memref<8x20xf32, #tpu.memory_space<vmem>>, vector<8x20xf32>
    %cst_21 = arith.constant 5.000000e-01 : f32
    %32 = vector.broadcast %cst_21 : f32 to vector<8x20xf32>
    %33 = arith.mulf %32, %30 : vector<8x20xf32>
    %34 = math.exp %33 : vector<8x20xf32>
    %35 = arith.mulf %31, %34 : vector<8x20xf32>
    %36 = arith.addf %29, %35 : vector<8x20xf32>
    %37 = arith.truncf %36 : vector<8x20xf32> to vector<8x20xbf16>
    %c0_22 = arith.constant 0 : index
    %c0_23 = arith.constant 0 : index
    %38 = vector.load %arg9[%c0_22, %c0_23] : memref<20x256xbf16, #tpu.memory_space<vmem>>, vector<20x256xbf16>
    %cst_24 = arith.constant dense<0.000000e+00> : vector<8x256xf32>
    %39 = tpu.matmul %37, %38, %cst_24 {dimension_numbers = #tpu.dot_dimension_numbers<[1], [0], [0], [1], [0, 0, 1, 1], [], []>} : vector<8x20xbf16>, vector<20x256xbf16>, vector<8x256xf32> -> vector<8x256xf32>
    %c0_25 = arith.constant 0 : index
    %c0_26 = arith.constant 0 : index
    %40 = vector.load %arg10[%c0_25, %c0_26] : memref<1x256xf32, #tpu.memory_space<vmem>>, vector<1x256xf32>
    %41 = vector.broadcast %40 : vector<1x256xf32> to vector<8x256xf32>
    %42 = arith.addf %39, %41 : vector<8x256xf32>
    %cst_27 = arith.constant 0.000000e+00 : f32
    %43 = vector.broadcast %cst_27 : f32 to vector<8x256xf32>
    %44 = arith.cmpf ogt, %42, %43 : vector<8x256xf32>
    %cst_28 = arith.constant 0.00999999977 : f32
    %45 = vector.broadcast %cst_28 : f32 to vector<8x256xf32>
    %46 = arith.mulf %45, %42 : vector<8x256xf32>
    %47 = arith.select %44, %42, %46 : vector<8x256xi1>, vector<8x256xf32>
    %cst_29 = arith.constant dense<0.000000e+00> : vector<8xf32>
    %48 = vector.multi_reduction <add>, %47, %cst_29 [1] : vector<8x256xf32> to vector<8xf32>
    %49 = vector.shape_cast %48 : vector<8xf32> to vector<8x1xf32>
    %cst_30 = arith.constant 2.560000e+02 : f32
    %50 = vector.broadcast %cst_30 : f32 to vector<8x1xf32>
    %51 = arith.divf %49, %50 : vector<8x1xf32>
    %52 = arith.mulf %47, %47 : vector<8x256xf32>
    %cst_31 = arith.constant dense<0.000000e+00> : vector<8xf32>
    %53 = vector.multi_reduction <add>, %52, %cst_31 [1] : vector<8x256xf32> to vector<8xf32>
    %54 = vector.shape_cast %53 : vector<8xf32> to vector<8x1xf32>
    %cst_32 = arith.constant 2.560000e+02 : f32
    %55 = vector.broadcast %cst_32 : f32 to vector<8x1xf32>
    %56 = arith.divf %54, %55 : vector<8x1xf32>
    %57 = arith.mulf %51, %51 : vector<8x1xf32>
    %58 = arith.subf %56, %57 : vector<8x1xf32>
    %59 = vector.broadcast %51 : vector<8x1xf32> to vector<8x256xf32>
    %60 = arith.subf %47, %59 : vector<8x256xf32>
    %cst_33 = arith.constant 9.99999974E-6 : f32
    %61 = vector.broadcast %cst_33 : f32 to vector<8x1xf32>
    %62 = arith.addf %58, %61 : vector<8x1xf32>
    %63 = math.rsqrt %62 : vector<8x1xf32>
    %64 = vector.broadcast %63 : vector<8x1xf32> to vector<8x256xf32>
    %65 = arith.mulf %60, %64 : vector<8x256xf32>
    %c0_34 = arith.constant 0 : index
    %c0_35 = arith.constant 0 : index
    %66 = vector.load %arg11[%c0_34, %c0_35] : memref<1x256xf32, #tpu.memory_space<vmem>>, vector<1x256xf32>
    %67 = vector.broadcast %66 : vector<1x256xf32> to vector<8x256xf32>
    %68 = arith.mulf %65, %67 : vector<8x256xf32>
    %c0_36 = arith.constant 0 : index
    %c0_37 = arith.constant 0 : index
    %69 = vector.load %arg12[%c0_36, %c0_37] : memref<1x256xf32, #tpu.memory_space<vmem>>, vector<1x256xf32>
    %70 = vector.broadcast %69 : vector<1x256xf32> to vector<8x256xf32>
    %71 = arith.addf %68, %70 : vector<8x256xf32>
    %72 = arith.truncf %71 : vector<8x256xf32> to vector<8x256xbf16>
    %c0_38 = arith.constant 0 : index
    %c0_39 = arith.constant 0 : index
    %73 = vector.load %arg13[%c0_38, %c0_39] : memref<256x512xbf16, #tpu.memory_space<vmem>>, vector<256x512xbf16>
    %cst_40 = arith.constant dense<0.000000e+00> : vector<8x512xf32>
    %74 = tpu.matmul %72, %73, %cst_40 {dimension_numbers = #tpu.dot_dimension_numbers<[1], [0], [0], [1], [0, 0, 1, 1], [], []>} : vector<8x256xbf16>, vector<256x512xbf16>, vector<8x512xf32> -> vector<8x512xf32>
    %c0_41 = arith.constant 0 : index
    %c0_42 = arith.constant 0 : index
    %75 = vector.load %arg14[%c0_41, %c0_42] : memref<1x512xf32, #tpu.memory_space<vmem>>, vector<1x512xf32>
    %76 = vector.broadcast %75 : vector<1x512xf32> to vector<8x512xf32>
    %77 = arith.addf %74, %76 : vector<8x512xf32>
    %cst_43 = arith.constant 0.000000e+00 : f32
    %78 = vector.broadcast %cst_43 : f32 to vector<8x512xf32>
    %79 = arith.cmpf ogt, %77, %78 : vector<8x512xf32>
    %cst_44 = arith.constant 0.00999999977 : f32
    %80 = vector.broadcast %cst_44 : f32 to vector<8x512xf32>
    %81 = arith.mulf %80, %77 : vector<8x512xf32>
    %82 = arith.select %79, %77, %81 : vector<8x512xi1>, vector<8x512xf32>
    %83 = arith.truncf %82 : vector<8x512xf32> to vector<8x512xbf16>
    %c0_45 = arith.constant 0 : index
    %c0_46 = arith.constant 0 : index
    %84 = vector.load %arg15[%c0_45, %c0_46] : memref<512x32xbf16, #tpu.memory_space<vmem>>, vector<512x32xbf16>
    %cst_47 = arith.constant dense<0.000000e+00> : vector<8x32xf32>
    %85 = tpu.matmul %83, %84, %cst_47 {dimension_numbers = #tpu.dot_dimension_numbers<[1], [0], [0], [1], [0, 0, 1, 1], [], []>} : vector<8x512xbf16>, vector<512x32xbf16>, vector<8x32xf32> -> vector<8x32xf32>
    %c0_48 = arith.constant 0 : index
    %c0_49 = arith.constant 0 : index
    %86 = vector.load %arg16[%c0_48, %c0_49] : memref<1x32xf32, #tpu.memory_space<vmem>>, vector<1x32xf32>
    %87 = vector.broadcast %86 : vector<1x32xf32> to vector<8x32xf32>
    %88 = arith.addf %85, %87 : vector<8x32xf32>
    %89 = arith.negf %88 : vector<8x32xf32>
    %90 = math.exp %89 : vector<8x32xf32>
    %cst_50 = arith.constant 1.000000e+00 : f32
    %91 = vector.broadcast %cst_50 : f32 to vector<8x32xf32>
    %92 = arith.addf %91, %90 : vector<8x32xf32>
    %93 = arith.divf %91, %92 : vector<8x32xf32>
    %c0_51 = arith.constant 0 : index
    %c0_52 = arith.constant 0 : index
    %94 = vector.load %arg17[%c0_51, %c0_52] : memref<8x32xf32, #tpu.memory_space<vmem>>, vector<8x32xf32>
    tpu.vector_store %arg17[%c0_51, %c0_52], %93 {strides = array<i32>} : memref<8x32xf32, #tpu.memory_space<vmem>>, vector<8x32xf32>,
    %c0_53 = arith.constant 0 : index
    %c0_54 = arith.constant 0 : index
    %95 = vector.load %arg18[%c0_53, %c0_54] : memref<8x40xf32, #tpu.memory_space<vmem>>, vector<8x40xf32>
    tpu.vector_store %arg18[%c0_53, %c0_54], %28 {strides = array<i32>} : memref<8x40xf32, #tpu.memory_space<vmem>>, vector<8x40xf32>,
    return
  }
  func.func @transform_0(%arg0: i32) -> (i32, i32) {
    %c0_i32 = arith.constant 0 : i32
    %c0_i32_0 = arith.constant 0 : i32
    return %arg0, %c0_i32 : i32, i32
  }
  func.func @transform_1(%arg0: i32) -> (i32, i32) {
    %c0_i32 = arith.constant 0 : i32
    %c0_i32_0 = arith.constant 0 : i32
    return %arg0, %c0_i32 : i32, i32
  }
  func.func @transform_2(%arg0: i32) -> (i32, i32) {
    %c0_i32 = arith.constant 0 : i32
    %c0_i32_0 = arith.constant 0 : i32
    %c0_i32_1 = arith.constant 0 : i32
    return %c0_i32, %c0_i32_0 : i32, i32
  }
  func.func @transform_3(%arg0: i32) -> (i32, i32) {
    %c0_i32 = arith.constant 0 : i32
    %c0_i32_0 = arith.constant 0 : i32
    %c0_i32_1 = arith.constant 0 : i32
    return %c0_i32, %c0_i32_0 : i32, i32
  }
  func.func @transform_4(%arg0: i32) -> (i32, i32) {
    %c0_i32 = arith.constant 0 : i32
    %c0_i32_0 = arith.constant 0 : i32
    %c0_i32_1 = arith.constant 0 : i32
    return %c0_i32, %c0_i32_0 : i32, i32
  }
  func.func @transform_5(%arg0: i32) -> (i32, i32) {
    %c0_i32 = arith.constant 0 : i32
    %c0_i32_0 = arith.constant 0 : i32
    %c0_i32_1 = arith.constant 0 : i32
    return %c0_i32, %c0_i32_0 : i32, i32
  }
  func.func @transform_6(%arg0: i32) -> (i32, i32) {
    %c0_i32 = arith.constant 0 : i32
    %c0_i32_0 = arith.constant 0 : i32
    %c0_i32_1 = arith.constant 0 : i32
    return %c0_i32, %c0_i32_0 : i32, i32
  }
  func.func @transform_7(%arg0: i32) -> (i32, i32) {
    %c0_i32 = arith.constant 0 : i32
    %c0_i32_0 = arith.constant 0 : i32
    %c0_i32_1 = arith.constant 0 : i32
    return %c0_i32, %c0_i32_0 : i32, i32
  }
  func.func @transform_8(%arg0: i32) -> (i32, i32) {
    %c0_i32 = arith.constant 0 : i32
    %c0_i32_0 = arith.constant 0 : i32
    %c0_i32_1 = arith.constant 0 : i32
    return %c0_i32, %c0_i32_0 : i32, i32
  }
  func.func @transform_9(%arg0: i32) -> (i32, i32) {
    %c0_i32 = arith.constant 0 : i32
    %c0_i32_0 = arith.constant 0 : i32
    %c0_i32_1 = arith.constant 0 : i32
    return %c0_i32, %c0_i32_0 : i32, i32
  }
  func.func @transform_10(%arg0: i32) -> (i32, i32) {
    %c0_i32 = arith.constant 0 : i32
    %c0_i32_0 = arith.constant 0 : i32
    %c0_i32_1 = arith.constant 0 : i32
    return %c0_i32, %c0_i32_0 : i32, i32
  }
  func.func @transform_11(%arg0: i32) -> (i32, i32) {
    %c0_i32 = arith.constant 0 : i32
    %c0_i32_0 = arith.constant 0 : i32
    %c0_i32_1 = arith.constant 0 : i32
    return %c0_i32, %c0_i32_0 : i32, i32
  }
  func.func @transform_12(%arg0: i32) -> (i32, i32) {
    %c0_i32 = arith.constant 0 : i32
    %c0_i32_0 = arith.constant 0 : i32
    %c0_i32_1 = arith.constant 0 : i32
    return %c0_i32, %c0_i32_0 : i32, i32
  }
  func.func @transform_13(%arg0: i32) -> (i32, i32) {
    %c0_i32 = arith.constant 0 : i32
    %c0_i32_0 = arith.constant 0 : i32
    %c0_i32_1 = arith.constant 0 : i32
    return %c0_i32, %c0_i32_0 : i32, i32
  }
  func.func @transform_14(%arg0: i32) -> (i32, i32) {
    %c0_i32 = arith.constant 0 : i32
    %c0_i32_0 = arith.constant 0 : i32
    %c0_i32_1 = arith.constant 0 : i32
    return %c0_i32, %c0_i32_0 : i32, i32
  }
  func.func @transform_15(%arg0: i32) -> (i32, i32) {
    %c0_i32 = arith.constant 0 : i32
    %c0_i32_0 = arith.constant 0 : i32
    %c0_i32_1 = arith.constant 0 : i32
    return %c0_i32, %c0_i32_0 : i32, i32
  }
  func.func @transform_16(%arg0: i32) -> (i32, i32) {
    %c0_i32 = arith.constant 0 : i32
    %c0_i32_0 = arith.constant 0 : i32
    return %arg0, %c0_i32 : i32, i32
  }
  func.func @transform_17(%arg0: i32) -> (i32, i32) {
    %c0_i32 = arith.constant 0 : i32
    %c0_i32_0 = arith.constant 0 : i32
    return %arg0, %c0_i32 : i32, i32
  }
}

</mosaic_0001>

<llo_original>
// kernel: tpu_custom_call.1
$region0: #{tpu_custom_call.1}
  #allocation0 [shape = 'u32[]', space=smem, size = 0x4, offset = 0x4, fixed_abs, tag = 'smem constant byte address 0x4 - core index']
  #allocation1 [shape = 'u32[144,128]{1,0:T(1,128)}', space=vmem, size = 0x12000, scoped, tag = 'internal scratch']
  %s0 = inlined_call_operand.vmem [shape: f32[8,32], index: 0, kind: input, shape index: {}]
  %s1 = inlined_call_operand.vmem [shape: f32[8,20], index: 1, kind: input, shape index: {}]
  %s2 = inlined_call_operand.hbm [shape: bf16[32,512], index: 2, kind: input, shape index: {}]
  %s3 = inlined_call_operand.vmem [shape: f32[1,512], index: 3, kind: input, shape index: {}]
  %s4 = inlined_call_operand.hbm [shape: bf16[512,256], index: 4, kind: input, shape index: {}]
  %s5 = inlined_call_operand.hbm [shape: f32[1,256], index: 5, kind: input, shape index: {}]
  %s6 = inlined_call_operand.vmem [shape: bf16[256,40], index: 6, kind: input, shape index: {}]
  %s7 = inlined_call_operand.vmem [shape: f32[1,40], index: 7, kind: input, shape index: {}]
  %s8 = inlined_call_operand.hbm [shape: bf16[20,256], index: 8, kind: input, shape index: {}]
  %s9 = inlined_call_operand.hbm [shape: f32[1,256], index: 9, kind: input, shape index: {}]
  %s10 = inlined_call_operand.hbm [shape: f32[1,256], index: 10, kind: input, shape index: {}]
  %s11 = inlined_call_operand.hbm [shape: f32[1,256], index: 11, kind: input, shape index: {}]
  %s12 = inlined_call_operand.vmem [shape: bf16[256,512], index: 12, kind: input, shape index: {}]
  %s13 = inlined_call_operand.hbm [shape: f32[1,512], index: 13, kind: input, shape index: {}]
  %s14 = inlined_call_operand.vmem [shape: bf16[512,32], index: 14, kind: input, shape index: {}]
  %s15 = inlined_call_operand.vmem [shape: f32[1,32], index: 15, kind: input, shape index: {}]
  %s16 = inlined_call_operand.hbm [shape: f32[8,32], index: 16, kind: output, shape index: {0}]
  %s17 = inlined_call_operand.hbm [shape: f32[8,40], index: 17, kind: output, shape index: {1}]
  %18 = xla_tuple %s16, %s17
  %s19 = sld [smem:[#allocation0]]
  $region114: #{tpu_custom_call.1} parent=0
    _
  %s21 = ssub.s32 1, %s19
  %s22 = scalar_select 0, %s21, %s19
  $region1: #{tpu_custom_call.1} parent=0
    #allocation2 [shape = 'u8[32768]{0}', space=vmem, size = 0x8000, scoped, tag = 'input window, operand 2, single buffered']
    #allocation3 [shape = 's32[1]{0}', space=sflag, size = 0x4, scoped, tag = 'scoped memory for tpu_custom_call.1']
    #allocation4 [shape = 's32[1]{0}', space=sflag, size = 0x4, scoped, tag = 'scoped memory for tpu_custom_call.1']
    #allocation5 [shape = 'u8[262144]{0}', space=vmem, size = 0x40000, scoped, tag = 'input window, operand 4, single buffered']
    #allocation6 [shape = 's32[1]{0}', space=sflag, size = 0x4, scoped, tag = 'scoped memory for tpu_custom_call.1']
    #allocation7 [shape = 'u8[1024]{0}', space=vmem, size = 0x400, scoped, tag = 'input window, operand 5, single buffered']
    #allocation8 [shape = 'u8[12288]{0}', space=vmem, size = 0x3000, scoped, tag = 'input window, operand 8, single buffered']
    #allocation9 [shape = 's32[1]{0}', space=sflag, size = 0x4, scoped, tag = 'scoped memory for tpu_custom_call.1']
    #allocation10 [shape = 'u8[1024]{0}', space=vmem, size = 0x400, scoped, tag = 'input window, operand 9, single buffered']
    #allocation11 [shape = 'u8[1024]{0}', space=vmem, size = 0x400, scoped, tag = 'input window, operand 10, single buffered']
    #allocation12 [shape = 's32[1]{0}', space=sflag, size = 0x4, scoped, tag = 'scoped memory for tpu_custom_call.1']
    #allocation13 [shape = 'u8[1024]{0}', space=vmem, size = 0x400, scoped, tag = 'input window, operand 11, single buffered']
    #allocation14 [shape = 'u8[2048]{0}', space=vmem, size = 0x800, scoped, tag = 'input window, operand 13, single buffered']
    #allocation15 [shape = 's32[1]{0}', space=sflag, size = 0x4, scoped, tag = 'scoped memory for tpu_custom_call.1']
    #allocation16 [shape = 'u8[4096]{0}', space=vmem, size = 0x1000, scoped, tag = 'output window, operand 0, single buffered']
    #allocation17 [shape = 'u8[4096]{0}', space=vmem, size = 0x1000, scoped, tag = 'output window, operand 1, single buffered']
    #allocation18 [shape = 's32[1]{0}', space=sflag, size = 0x4, scoped, tag = 'scoped memory for tpu_custom_call.1']
    %23 = vsyncpa [#allocation3], 0
    %24 = vsyncpa [#allocation6], 0
    %25 = vsyncpa [#allocation9], 0
    %26 = vsyncpa [#allocation12], 0
    %27 = vsyncpa [#allocation15], 0
    %28 = vsyncpa [#allocation4], 0
    %29 = vsyncpa [#allocation18], 0
    // Predicated region
    $region2: #{tpu_custom_call.1} parent=1 // pred_check
      _
    $region3: #{tpu_custom_call.1} parent=1 // pred_check_branch
      %31 = sbr.rel (0) target = $region5
    $region4: #{tpu_custom_call.1} parent=1 // pred_region
      _
    $region5: #{tpu_custom_call.1} parent=1 // pred_fallthru
      _
    // Predicated region
    $region6: #{tpu_custom_call.1} parent=1 // pred_check
      _
    $region7: #{tpu_custom_call.1} parent=1 // pred_check_branch
      %33 = sbr.rel (0) target = $region9
    $region8: #{tpu_custom_call.1} parent=1 // pred_region
      _
    $region9: #{tpu_custom_call.1} parent=1 // pred_fallthru
      _
    // Predicated region
    $region10: #{tpu_custom_call.1} parent=1 // pred_check
      _
    $region11: #{tpu_custom_call.1} parent=1 // pred_check_branch
      %35 = sbr.rel (0) target = $region13
    $region12: #{tpu_custom_call.1} parent=1 // pred_region
      %s37 = ssub.s32 1024, 1024
      %38 = vsyncadd [#allocation3], %s37
      %s39 = sshll.u32 [#allocation2], 4
      %s40 = int_to_ptr.vmem [resolvable:$true] %s39
      %45 = dma.hbm_to_vmem [thread:$0]  %s2, 1024, %s40, [#allocation3], 256, 256, 16
    $region13: #{tpu_custom_call.1} parent=1 // pred_fallthru
      _
    // Predicated region
    $region14: #{tpu_custom_call.1} parent=1 // pred_check
      _
    $region15: #{tpu_custom_call.1} parent=1 // pred_check_branch
      %47 = sbr.rel (0) target = $region17
    $region16: #{tpu_custom_call.1} parent=1 // pred_region
      _
    $region17: #{tpu_custom_call.1} parent=1 // pred_fallthru
      _
    // Predicated region
    $region18: #{tpu_custom_call.1} parent=1 // pred_check
      _
    $region19: #{tpu_custom_call.1} parent=1 // pred_check_branch
      %49 = sbr.rel (0) target = $region21
    $region20: #{tpu_custom_call.1} parent=1 // pred_region
      %s51 = ssub.s32 8192, 8192
      %52 = vsyncadd [#allocation6], %s51
      %s53 = sshll.u32 [#allocation5], 4
      %s54 = int_to_ptr.vmem [resolvable:$true] %s53
      %59 = dma.hbm_to_vmem [thread:$0]  %s4, 8192, %s54, [#allocation6], 128, 128, 8
    $region21: #{tpu_custom_call.1} parent=1 // pred_fallthru
      _
    // Predicated region
    $region22: #{tpu_custom_call.1} parent=1 // pred_check
      _
    $region23: #{tpu_custom_call.1} parent=1 // pred_check_branch
      %61 = sbr.rel (0) target = $region25
    $region24: #{tpu_custom_call.1} parent=1 // pred_region
      %s63 = ssub.s32 32, 32
      %64 = vsyncadd [#allocation6], %s63
      %s66 = sshll.u32 [#allocation7], 4
      %s67 = int_to_ptr.vmem [resolvable:$true] %s66
      %69 = dma.hbm_to_vmem [thread:$0]  %s5, 32, %s67, [#allocation6]
    $region25: #{tpu_custom_call.1} parent=1 // pred_fallthru
      _
    // Predicated region
    $region26: #{tpu_custom_call.1} parent=1 // pred_check
      _
    $region27: #{tpu_custom_call.1} parent=1 // pred_check_branch
      %71 = sbr.rel (0) target = $region29
    $region28: #{tpu_custom_call.1} parent=1 // pred_region
      _
    $region29: #{tpu_custom_call.1} parent=1 // pred_fallthru
      _
    // Predicated region
    $region30: #{tpu_custom_call.1} parent=1 // pred_check
      _
    $region31: #{tpu_custom_call.1} parent=1 // pred_check_branch
      %73 = sbr.rel (0) target = $region33
    $region32: #{tpu_custom_call.1} parent=1 // pred_region
      _
    $region33: #{tpu_custom_call.1} parent=1 // pred_fallthru
      _
    // Predicated region
    $region34: #{tpu_custom_call.1} parent=1 // pred_check
      _
    $region35: #{tpu_custom_call.1} parent=1 // pred_check_branch
      %75 = sbr.rel (0) target = $region37
    $region36: #{tpu_custom_call.1} parent=1 // pred_region
      %s77 = ssub.s32 384, 384
      %78 = vsyncadd [#allocation9], %s77
      %s79 = sshll.u32 [#allocation8], 4
      %s80 = int_to_ptr.vmem [resolvable:$true] %s79
      %85 = dma.hbm_to_vmem [thread:$0]  %s8, 384, %s80, [#allocation9], 128, 128, 8
    $region37: #{tpu_custom_call.1} parent=1 // pred_fallthru
      _
    // Predicated region
    $region38: #{tpu_custom_call.1} parent=1 // pred_check
      _
    $region39: #{tpu_custom_call.1} parent=1 // pred_check_branch
      %87 = sbr.rel (0) target = $region41
    $region40: #{tpu_custom_call.1} parent=1 // pred_region
      %s89 = ssub.s32 32, 32
      %90 = vsyncadd [#allocation9], %s89
      %s92 = sshll.u32 [#allocation10], 4
      %s93 = int_to_ptr.vmem [resolvable:$true] %s92
      %95 = dma.hbm_to_vmem [thread:$0]  %s9, 32, %s93, [#allocation9]
    $region41: #{tpu_custom_call.1} parent=1 // pred_fallthru
      _
    // Predicated region
    $region42: #{tpu_custom_call.1} parent=1 // pred_check
      _
    $region43: #{tpu_custom_call.1} parent=1 // pred_check_branch
      %97 = sbr.rel (0) target = $region45
    $region44: #{tpu_custom_call.1} parent=1 // pred_region
      %s99 = ssub.s32 32, 32
      %100 = vsyncadd [#allocation12], %s99
      %s102 = sshll.u32 [#allocation11], 4
      %s103 = int_to_ptr.vmem [resolvable:$true] %s102
      %105 = dma.hbm_to_vmem [thread:$0]  %s10, 32, %s103, [#allocation12]
    $region45: #{tpu_custom_call.1} parent=1 // pred_fallthru
      _
    // Predicated region
    $region46: #{tpu_custom_call.1} parent=1 // pred_check
      _
    $region47: #{tpu_custom_call.1} parent=1 // pred_check_branch
      %107 = sbr.rel (0) target = $region49
    $region48: #{tpu_custom_call.1} parent=1 // pred_region
      %s109 = ssub.s32 32, 32
      %110 = vsyncadd [#allocation12], %s109
      %s112 = sshll.u32 [#allocation13], 4
      %s113 = int_to_ptr.vmem [resolvable:$true] %s112
      %115 = dma.hbm_to_vmem [thread:$0]  %s11, 32, %s113, [#allocation12]
    $region49: #{tpu_custom_call.1} parent=1 // pred_fallthru
      _
    // Predicated region
    $region50: #{tpu_custom_call.1} parent=1 // pred_check
      _
    $region51: #{tpu_custom_call.1} parent=1 // pred_check_branch
      %117 = sbr.rel (0) target = $region53
    $region52: #{tpu_custom_call.1} parent=1 // pred_region
      _
    $region53: #{tpu_custom_call.1} parent=1 // pred_fallthru
      _
    // Predicated region
    $region54: #{tpu_custom_call.1} parent=1 // pred_check
      _
    $region55: #{tpu_custom_call.1} parent=1 // pred_check_branch
      %119 = sbr.rel (0) target = $region57
    $region56: #{tpu_custom_call.1} parent=1 // pred_region
      %s121 = ssub.s32 64, 64
      %122 = vsyncadd [#allocation15], %s121
      %s124 = sshll.u32 [#allocation14], 4
      %s125 = int_to_ptr.vmem [resolvable:$true] %s124
      %127 = dma.hbm_to_vmem [thread:$0]  %s13, 64, %s125, [#allocation15]
    $region57: #{tpu_custom_call.1} parent=1 // pred_fallthru
      _
    // Predicated region
    $region58: #{tpu_custom_call.1} parent=1 // pred_check
      _
    $region59: #{tpu_custom_call.1} parent=1 // pred_check_branch
      %129 = sbr.rel (0) target = $region61
    $region60: #{tpu_custom_call.1} parent=1 // pred_region
      _
    $region61: #{tpu_custom_call.1} parent=1 // pred_fallthru
      _
    // Predicated region
    $region62: #{tpu_custom_call.1} parent=1 // pred_check
      _
    $region63: #{tpu_custom_call.1} parent=1 // pred_check_branch
      %131 = sbr.rel (0) target = $region65
    $region64: #{tpu_custom_call.1} parent=1 // pred_region
      _
    $region65: #{tpu_custom_call.1} parent=1 // pred_fallthru
      _
    // Predicated region
    $region66: #{tpu_custom_call.1} parent=1 // pred_check
      _
    $region67: #{tpu_custom_call.1} parent=1 // pred_check_branch
      %133 = sbr.rel (0) target = $region69
    $region68: #{tpu_custom_call.1} parent=1 // pred_region
      %134 = dma.done [#allocation3], 1024
    $region69: #{tpu_custom_call.1} parent=1 // pred_fallthru
      _
    // Predicated region
    $region70: #{tpu_custom_call.1} parent=1 // pred_check
      _
    $region71: #{tpu_custom_call.1} parent=1 // pred_check_branch
      %136 = sbr.rel (0) target = $region73
    $region72: #{tpu_custom_call.1} parent=1 // pred_region
      %137 = dma.done [#allocation6], 8192
    $region73: #{tpu_custom_call.1} parent=1 // pred_fallthru
      _
    // Predicated region
    $region74: #{tpu_custom_call.1} parent=1 // pred_check
      _
    $region75: #{tpu_custom_call.1} parent=1 // pred_check_branch
      %139 = sbr.rel (0) target = $region77
    $region76: #{tpu_custom_call.1} parent=1 // pred_region
      %140 = dma.done [#allocation6], 32
    $region77: #{tpu_custom_call.1} parent=1 // pred_fallthru
      _
    // Predicated region
    $region78: #{tpu_custom_call.1} parent=1 // pred_check
      _
    $region79: #{tpu_custom_call.1} parent=1 // pred_check_branch
      %142 = sbr.rel (0) target = $region81
    $region80: #{tpu_custom_call.1} parent=1 // pred_region
      %143 = dma.done [#allocation9], 384
    $region81: #{tpu_custom_call.1} parent=1 // pred_fallthru
      _
    // Predicated region
    $region82: #{tpu_custom_call.1} parent=1 // pred_check
      _
    $region83: #{tpu_custom_call.1} parent=1 // pred_check_branch
      %145 = sbr.rel (0) target = $region85
    $region84: #{tpu_custom_call.1} parent=1 // pred_region
      %146 = dma.done [#allocation9], 32
    $region85: #{tpu_custom_call.1} parent=1 // pred_fallthru
      _
    // Predicated region
    $region86: #{tpu_custom_call.1} parent=1 // pred_check
      _
    $region87: #{tpu_custom_call.1} parent=1 // pred_check_branch
      %148 = sbr.rel (0) target = $region89
    $region88: #{tpu_custom_call.1} parent=1 // pred_region
      %149 = dma.done [#allocation12], 32
    $region89: #{tpu_custom_call.1} parent=1 // pred_fallthru
      _
    // Predicated region
    $region90: #{tpu_custom_call.1} parent=1 // pred_check
      _
    $region91: #{tpu_custom_call.1} parent=1 // pred_check_branch
      %151 = sbr.rel (0) target = $region93
    $region92: #{tpu_custom_call.1} parent=1 // pred_region
      %152 = dma.done [#allocation12], 32
    $region93: #{tpu_custom_call.1} parent=1 // pred_fallthru
      _
    // Predicated region
    $region94: #{tpu_custom_call.1} parent=1 // pred_check
      _
    $region95: #{tpu_custom_call.1} parent=1 // pred_check_branch
      %154 = sbr.rel (0) target = $region97
    $region96: #{tpu_custom_call.1} parent=1 // pred_region
      %155 = dma.done [#allocation15], 64
    $region97: #{tpu_custom_call.1} parent=1 // pred_fallthru
      _
    %v157 = vld [vmem:[%s0] sm:$0xff]
    %v158 = vpack.c.bf16 %v157, %v157
    %v159 = vld [vmem:[#allocation2] sm:$0xff]
    %v160 = vld [vmem:[#allocation2 + $0x8] sm:$0xff]
    %v161 = vld [vmem:[#allocation2 + $0x10] sm:$0xff]
    %v162 = vld [vmem:[#allocation2 + $0x18] sm:$0xff]
    %v163 = vld [vmem:[#allocation2 + $0x20] sm:$0xff]
    %v164 = vld [vmem:[#allocation2 + $0x28] sm:$0xff]
    %v165 = vld [vmem:[#allocation2 + $0x30] sm:$0xff]
    %v166 = vld [vmem:[#allocation2 + $0x38] sm:$0xff]
    %v167 = vld [vmem:[%s3] sm:$0xf]
    %v169 = vlaneseq
    %v170 = vshrl.u32 %v169, 7
    %v171 = vsub.s32 0, %v170
    %v172 = vrot.slane %v167, %v171
    %v173 = vlaneseq
    %v174 = vshrl.u32 %v173, 7
    %v175 = vsub.s32 1, %v174
    %v176 = vrot.slane %v167, %v175
    %v177 = vlaneseq
    %v178 = vshrl.u32 %v177, 7
    %v179 = vsub.s32 2, %v178
    %v180 = vrot.slane %v167, %v179
    %v181 = vlaneseq
    %v182 = vshrl.u32 %v181, 7
    %v183 = vsub.s32 3, %v182
    %v184 = vrot.slane %v167, %v183
    %v197 = vunpack.c.l.b16 %v159
    %v198 = vunpack.c.h.b16 %v159
    %v199 = vunpack.c.l.b16 %v160
    %v200 = vunpack.c.h.b16 %v160
    %v201 = vunpack.c.l.b16 %v161
    %v202 = vunpack.c.h.b16 %v161
    %v203 = vunpack.c.l.b16 %v162
    %v204 = vunpack.c.h.b16 %v162
    %v205 = vunpack.c.l.b16 %v163
    %v206 = vunpack.c.h.b16 %v163
    %v207 = vunpack.c.l.b16 %v164
    %v208 = vunpack.c.h.b16 %v164
    %v209 = vunpack.c.l.b16 %v165
    %v210 = vunpack.c.h.b16 %v165
    %v211 = vunpack.c.l.b16 %v166
    %v212 = vunpack.c.h.b16 %v166
    %v213 = vpack.c.b16 %v201, %v197
    %v214 = vpack.c.b16 %v202, %v198
    %v215 = vpack.c.b16 %v203, %v199
    %v216 = vpack.c.b16 %v204, %v200
    %v217 = vpack.c.b16 %v209, %v205
    %v218 = vpack.c.b16 %v210, %v206
    %v219 = vpack.c.b16 %v211, %v207
    %v220 = vpack.c.b16 %v212, %v208
    %vm229 = vcmask 261120
    %v231 = vsel %vm229, %v158, 0
    %233 = vmatprep.subr.bf16.mxu0 %v214
    %234 = vmatpush1.bf16.msra.mxu0 %v213
    %235 = vmatprep.subr.bf16.mxu0 %v218
    %236 = vmatpush1.bf16.msra.mxu0 %v217
    %237 = vmatprep.subr.bf16.mxu0 0
    %238 = vmatpush1.bf16.msra.mxu0 0
    %239 = vmatprep.subr.bf16.mxu0 0
    %240 = vmatpush1.bf16.msra.mxu0 0
    %241 = vmatprep.subr.bf16.mxu0 0
    %242 = vmatpush1.bf16.msra.mxu0 0
    %243 = vmatprep.subr.bf16.mxu0 0
    %244 = vmatpush1.bf16.msra.mxu0 0
    %245 = vmatprep.subr.bf16.mxu0 0
    %246 = vmatpush1.bf16.msra.mxu0 0
    %247 = vmatprep.subr.bf16.mxu0 0
    %248 = vmatpush1.bf16.msra.mxu0 0
    %249 = vmatprep.subr.bf16.mxu0 0
    %250 = vmatpush1.bf16.msra.mxu0 0
    %251 = vmatprep.subr.bf16.mxu0 0
    %252 = vmatpush1.bf16.msra.mxu0 0
    %253 = vmatprep.subr.bf16.mxu0 0
    %254 = vmatpush1.bf16.msra.mxu0 0
    %255 = vmatprep.subr.bf16.mxu0 0
    %256 = vmatpush1.bf16.msra.mxu0 0
    %257 = vmatprep.subr.bf16.mxu0 0
    %258 = vmatpush1.bf16.msra.mxu0 0
    %259 = vmatprep.subr.bf16.mxu0 0
    %260 = vmatpush1.bf16.msra.mxu0 0
    %261 = vmatprep.subr.bf16.mxu0 0
    %262 = vmatpush1.bf16.msra.mxu0 0
    %263 = vmatprep.subr.bf16.mxu0 0
    %264 = vmatpush1.bf16.msra.mxu0 0
    %265 = vmatprep.mubr.bf16.mxu0 0
    %266 = vmatmul.mubr.bf16.gmra.mrb[0].mxu0 %v231
    %v267 = vpop.f32.mrb[0].mxu0
    %v268 = vadd.f32 %v172, %v267
    %v269 = vpop.f32.mrb[0].mxu0
    %v270 = vadd.f32 %v176, %v269
    %v271 = vpop.f32.mrb[0].mxu0
    %v272 = vpop.f32.mrb[0].mxu0
    %273 = vdwg.mxu0
    %274 = vmatprep.subr.bf16.mxu0 %v216
    %275 = vmatpush1.bf16.msra.mxu0 %v215
    %276 = vmatprep.subr.bf16.mxu0 %v220
    %277 = vmatpush1.bf16.msra.mxu0 %v219
    %278 = vmatprep.subr.bf16.mxu0 0
    %279 = vmatpush1.bf16.msra.mxu0 0
    %280 = vmatprep.subr.bf16.mxu0 0
    %281 = vmatpush1.bf16.msra.mxu0 0
    %282 = vmatprep.subr.bf16.mxu0 0
    %283 = vmatpush1.bf16.msra.mxu0 0
    %284 = vmatprep.subr.bf16.mxu0 0
    %285 = vmatpush1.bf16.msra.mxu0 0
    %286 = vmatprep.subr.bf16.mxu0 0
    %287 = vmatpush1.bf16.msra.mxu0 0
    %288 = vmatprep.subr.bf16.mxu0 0
    %289 = vmatpush1.bf16.msra.mxu0 0
    %290 = vmatprep.subr.bf16.mxu0 0
    %291 = vmatpush1.bf16.msra.mxu0 0
    %292 = vmatprep.subr.bf16.mxu0 0
    %293 = vmatpush1.bf16.msra.mxu0 0
    %294 = vmatprep.subr.bf16.mxu0 0
    %295 = vmatpush1.bf16.msra.mxu0 0
    %296 = vmatprep.subr.bf16.mxu0 0
    %297 = vmatpush1.bf16.msra.mxu0 0
    %298 = vmatprep.subr.bf16.mxu0 0
    %299 = vmatpush1.bf16.msra.mxu0 0
    %300 = vmatprep.subr.bf16.mxu0 0
    %301 = vmatpush1.bf16.msra.mxu0 0
    %302 = vmatprep.subr.bf16.mxu0 0
    %303 = vmatpush1.bf16.msra.mxu0 0
    %304 = vmatprep.subr.bf16.mxu0 0
    %305 = vmatpush1.bf16.msra.mxu0 0
    %306 = vmatprep.mubr.bf16.mxu0 0
    %307 = vmatmul.mubr.bf16.gmra.mrb[0].mxu0 %v231
    %v308 = vpop.f32.mrb[0].mxu0
    %v309 = vadd.f32 %v180, %v308
    %v310 = vpop.f32.mrb[0].mxu0
    %v311 = vadd.f32 %v184, %v310
    %v312 = vpop.f32.mrb[0].mxu0
    %v313 = vpop.f32.mrb[0].mxu0
    %314 = vdwg.mxu0
    %vm315 = vcmp.gt.f32.partialorder %v268, 0.0
    %vm316 = vcmp.gt.f32.partialorder %v270, 0.0
    %vm317 = vcmp.gt.f32.partialorder %v309, 0.0
    %vm318 = vcmp.gt.f32.partialorder %v311, 0.0
    %v319 = vmul.f32 %v268, 0.01
    %v320 = vmul.f32 %v270, 0.01
    %v321 = vmul.f32 %v309, 0.01
    %v322 = vmul.f32 %v311, 0.01
    %v323 = vsel %vm315, %v268, %v319
    %v324 = vsel %vm316, %v270, %v320
    %v325 = vsel %vm317, %v309, %v321
    %v326 = vsel %vm318, %v311, %v322
    %v327 = vpack.c.bf16 %v323, %v323
    %v328 = vpack.c.bf16 %v324, %v324
    %v329 = vpack.c.bf16 %v325, %v325
    %v330 = vpack.c.bf16 %v326, %v326
    %v331 = vld [vmem:[#allocation5] sm:$0xff]
    %v332 = vld [vmem:[#allocation5 + $0x8] sm:$0xff]
    %v333 = vld [vmem:[#allocation5 + $0x10] sm:$0xff]
    %v334 = vld [vmem:[#allocation5 + $0x18] sm:$0xff]
    %v335 = vld [vmem:[#allocation5 + $0x20] sm:$0xff]
    %v336 = vld [vmem:[#allocation5 + $0x28] sm:$0xff]
    %v337 = vld [vmem:[#allocation5 + $0x30] sm:$0xff]
    %v338 = vld [vmem:[#allocation5 + $0x38] sm:$0xff]
    %v339 = vld [vmem:[#allocation5 + $0x40] sm:$0xff]
    %v340 = vld [vmem:[#allocation5 + $0x48] sm:$0xff]
    %v341 = vld [vmem:[#allocation5 + $0x50] sm:$0xff]
    %v342 = vld [vmem:[#allocation5 + $0x58] sm:$0xff]
    %v343 = vld [vmem:[#allocation5 + $0x60] sm:$0xff]
    %v344 = vld [vmem:[#allocation5 + $0x68] sm:$0xff]
    %v345 = vld [vmem:[#allocation5 + $0x70] sm:$0xff]
    %v346 = vld [vmem:[#allocation5 + $0x78] sm:$0xff]
    %v347 = vld [vmem:[#allocation5 + $0x80] sm:$0xff]
    %v348 = vld [vmem:[#allocation5 + $0x88] sm:$0xff]
    %v349 = vld [vmem:[#allocation5 + $0x90] sm:$0xff]
    %v350 = vld [vmem:[#allocation5 + $0x98] sm:$0xff]
    %v351 = vld [vmem:[#allocation5 + $0xa0] sm:$0xff]
    %v352 = vld [vmem:[#allocation5 + $0xa8] sm:$0xff]
    %v353 = vld [vmem:[#allocation5 + $0xb0] sm:$0xff]
    %v354 = vld [vmem:[#allocation5 + $0xb8] sm:$0xff]
    %v355 = vld [vmem:[#allocation5 + $0xc0] sm:$0xff]
    %v356 = vld [vmem:[#allocation5 + $0xc8] sm:$0xff]
    %v357 = vld [vmem:[#allocation5 + $0xd0] sm:$0xff]
    %v358 = vld [vmem:[#allocation5 + $0xd8] sm:$0xff]
    %v359 = vld [vmem:[#allocation5 + $0xe0] sm:$0xff]
    %v360 = vld [vmem:[#allocation5 + $0xe8] sm:$0xff]
    %v361 = vld [vmem:[#allocation5 + $0xf0] sm:$0xff]
    %v362 = vld [vmem:[#allocation5 + $0xf8] sm:$0xff]
    %v363 = vld [vmem:[#allocation5 + $0x100] sm:$0xff]
    %v364 = vld [vmem:[#allocation5 + $0x108] sm:$0xff]
    %v365 = vld [vmem:[#allocation5 + $0x110] sm:$0xff]
    %v366 = vld [vmem:[#allocation5 + $0x118] sm:$0xff]
    %v367 = vld [vmem:[#allocation5 + $0x120] sm:$0xff]
    %v368 = vld [vmem:[#allocation5 + $0x128] sm:$0xff]
    %v369 = vld [vmem:[#allocation5 + $0x130] sm:$0xff]
    %v370 = vld [vmem:[#allocation5 + $0x138] sm:$0xff]
    %v371 = vld [vmem:[#allocation5 + $0x140] sm:$0xff]
    %v372 = vld [vmem:[#allocation5 + $0x148] sm:$0xff]
    %v373 = vld [vmem:[#allocation5 + $0x150] sm:$0xff]
    %v374 = vld [vmem:[#allocation5 + $0x158] sm:$0xff]
    %v375 = vld [vmem:[#allocation5 + $0x160] sm:$0xff]
    %v376 = vld [vmem:[#allocation5 + $0x168] sm:$0xff]
    %v377 = vld [vmem:[#allocation5 + $0x170] sm:$0xff]
    %v378 = vld [vmem:[#allocation5 + $0x178] sm:$0xff]
    %v379 = vld [vmem:[#allocation5 + $0x180] sm:$0xff]
    %v380 = vld [vmem:[#allocation5 + $0x188] sm:$0xff]
    %v381 = vld [vmem:[#allocation5 + $0x190] sm:$0xff]
    %v382 = vld [vmem:[#allocation5 + $0x198] sm:$0xff]
    %v383 = vld [vmem:[#allocation5 + $0x1a0] sm:$0xff]
    %v384 = vld [vmem:[#allocation5 + $0x1a8] sm:$0xff]
    %v385 = vld [vmem:[#allocation5 + $0x1b0] sm:$0xff]
    %v386 = vld [vmem:[#allocation5 + $0x1b8] sm:$0xff]
    %v387 = vld [vmem:[#allocation5 + $0x1c0] sm:$0xff]
    %v388 = vld [vmem:[#allocation5 + $0x1c8] sm:$0xff]
    %v389 = vld [vmem:[#allocation5 + $0x1d0] sm:$0xff]
    %v390 = vld [vmem:[#allocation5 + $0x1d8] sm:$0xff]
    %v391 = vld [vmem:[#allocation5 + $0x1e0] sm:$0xff]
    %v392 = vld [vmem:[#allocation5 + $0x1e8] sm:$0xff]
    %v393 = vld [vmem:[#allocation5 + $0x1f0] sm:$0xff]
    %v394 = vld [vmem:[#allocation5 + $0x1f8] sm:$0xff]
    %v395 = vld [vmem:[#allocation7] sm:$0x3]
    %v397 = vlaneseq
    %v398 = vshrl.u32 %v397, 7
    %v399 = vsub.s32 0, %v398
    %v400 = vrot.slane %v395, %v399
    %v401 = vlaneseq
    %v402 = vshrl.u32 %v401, 7
    %v403 = vsub.s32 1, %v402
    %v404 = vrot.slane %v395, %v403
    %v471 = vunpack.c.l.b16 %v331
    %v472 = vunpack.c.h.b16 %v331
    %v473 = vunpack.c.l.b16 %v332
    %v474 = vunpack.c.h.b16 %v332
    %v475 = vunpack.c.l.b16 %v333
    %v476 = vunpack.c.h.b16 %v333
    %v477 = vunpack.c.l.b16 %v334
    %v478 = vunpack.c.h.b16 %v334
    %v479 = vunpack.c.l.b16 %v335
    %v480 = vunpack.c.h.b16 %v335
    %v481 = vunpack.c.l.b16 %v336
    %v482 = vunpack.c.h.b16 %v336
    %v483 = vunpack.c.l.b16 %v337
    %v484 = vunpack.c.h.b16 %v337
    %v485 = vunpack.c.l.b16 %v338
    %v486 = vunpack.c.h.b16 %v338
    %v487 = vunpack.c.l.b16 %v339
    %v488 = vunpack.c.h.b16 %v339
    %v489 = vunpack.c.l.b16 %v340
    %v490 = vunpack.c.h.b16 %v340
    %v491 = vunpack.c.l.b16 %v341
    %v492 = vunpack.c.h.b16 %v341
    %v493 = vunpack.c.l.b16 %v342
    %v494 = vunpack.c.h.b16 %v342
    %v495 = vunpack.c.l.b16 %v343
    %v496 = vunpack.c.h.b16 %v343
    %v497 = vunpack.c.l.b16 %v344
    %v498 = vunpack.c.h.b16 %v344
    %v499 = vunpack.c.l.b16 %v345
    %v500 = vunpack.c.h.b16 %v345
    %v501 = vunpack.c.l.b16 %v346
    %v502 = vunpack.c.h.b16 %v346
    %v503 = vunpack.c.l.b16 %v347
    %v504 = vunpack.c.h.b16 %v347
    %v505 = vunpack.c.l.b16 %v348
    %v506 = vunpack.c.h.b16 %v348
    %v507 = vunpack.c.l.b16 %v349
    %v508 = vunpack.c.h.b16 %v349
    %v509 = vunpack.c.l.b16 %v350
    %v510 = vunpack.c.h.b16 %v350
    %v511 = vunpack.c.l.b16 %v351
    %v512 = vunpack.c.h.b16 %v351
    %v513 = vunpack.c.l.b16 %v352
    %v514 = vunpack.c.h.b16 %v352
    %v515 = vunpack.c.l.b16 %v353
    %v516 = vunpack.c.h.b16 %v353
    %v517 = vunpack.c.l.b16 %v354
    %v518 = vunpack.c.h.b16 %v354
    %v519 = vunpack.c.l.b16 %v355
    %v520 = vunpack.c.h.b16 %v355
    %v521 = vunpack.c.l.b16 %v356
    %v522 = vunpack.c.h.b16 %v356
    %v523 = vunpack.c.l.b16 %v357
    %v524 = vunpack.c.h.b16 %v357
    %v525 = vunpack.c.l.b16 %v358
    %v526 = vunpack.c.h.b16 %v358
    %v527 = vunpack.c.l.b16 %v359
    %v528 = vunpack.c.h.b16 %v359
    %v529 = vunpack.c.l.b16 %v360
    %v530 = vunpack.c.h.b16 %v360
    %v531 = vunpack.c.l.b16 %v361
    %v532 = vunpack.c.h.b16 %v361
    %v533 = vunpack.c.l.b16 %v362
    %v534 = vunpack.c.h.b16 %v362
    %v535 = vunpack.c.l.b16 %v363
    %v536 = vunpack.c.h.b16 %v363
    %v537 = vunpack.c.l.b16 %v364
    %v538 = vunpack.c.h.b16 %v364
    %v539 = vunpack.c.l.b16 %v365
    %v540 = vunpack.c.h.b16 %v365
    %v541 = vunpack.c.l.b16 %v366
    %v542 = vunpack.c.h.b16 %v366
    %v543 = vunpack.c.l.b16 %v367
    %v544 = vunpack.c.h.b16 %v367
    %v545 = vunpack.c.l.b16 %v368
    %v546 = vunpack.c.h.b16 %v368
    %v547 = vunpack.c.l.b16 %v369
    %v548 = vunpack.c.h.b16 %v369
    %v549 = vunpack.c.l.b16 %v370
    %v550 = vunpack.c.h.b16 %v370
    %v551 = vunpack.c.l.b16 %v371
    %v552 = vunpack.c.h.b16 %v371
    %v553 = vunpack.c.l.b16 %v372
    %v554 = vunpack.c.h.b16 %v372
    %v555 = vunpack.c.l.b16 %v373
    %v556 = vunpack.c.h.b16 %v373
    %v557 = vunpack.c.l.b16 %v374
    %v558 = vunpack.c.h.b16 %v374
    %v559 = vunpack.c.l.b16 %v375
    %v560 = vunpack.c.h.b16 %v375
    %v561 = vunpack.c.l.b16 %v376
    %v562 = vunpack.c.h.b16 %v376
    %v563 = vunpack.c.l.b16 %v377
    %v564 = vunpack.c.h.b16 %v377
    %v565 = vunpack.c.l.b16 %v378
    %v566 = vunpack.c.h.b16 %v378
    %v567 = vunpack.c.l.b16 %v379
    %v568 = vunpack.c.h.b16 %v379
    %v569 = vunpack.c.l.b16 %v380
    %v570 = vunpack.c.h.b16 %v380
    %v571 = vunpack.c.l.b16 %v381
    %v572 = vunpack.c.h.b16 %v381
    %v573 = vunpack.c.l.b16 %v382
    %v574 = vunpack.c.h.b16 %v382
    %v575 = vunpack.c.l.b16 %v383
    %v576 = vunpack.c.h.b16 %v383
    %v577 = vunpack.c.l.b16 %v384
    %v578 = vunpack.c.h.b16 %v384
    %v579 = vunpack.c.l.b16 %v385
    %v580 = vunpack.c.h.b16 %v385
    %v581 = vunpack.c.l.b16 %v386
    %v582 = vunpack.c.h.b16 %v386
    %v583 = vunpack.c.l.b16 %v387
    %v584 = vunpack.c.h.b16 %v387
    %v585 = vunpack.c.l.b16 %v388
    %v586 = vunpack.c.h.b16 %v388
    %v587 = vunpack.c.l.b16 %v389
    %v588 = vunpack.c.h.b16 %v389
    %v589 = vunpack.c.l.b16 %v390
    %v590 = vunpack.c.h.b16 %v390
    %v591 = vunpack.c.l.b16 %v391
    %v592 = vunpack.c.h.b16 %v391
    %v593 = vunpack.c.l.b16 %v392
    %v594 = vunpack.c.h.b16 %v392
    %v595 = vunpack.c.l.b16 %v393
    %v596 = vunpack.c.h.b16 %v393
    %v597 = vunpack.c.l.b16 %v394
    %v598 = vunpack.c.h.b16 %v394
    %v599 = vpack.c.b16 %v473, %v471
    %v600 = vpack.c.b16 %v474, %v472
    %v601 = vpack.c.b16 %v477, %v475
    %v602 = vpack.c.b16 %v478, %v476
    %v603 = vpack.c.b16 %v481, %v479
    %v604 = vpack.c.b16 %v482, %v480
    %v605 = vpack.c.b16 %v485, %v483
    %v606 = vpack.c.b16 %v486, %v484
    %v607 = vpack.c.b16 %v489, %v487
    %v608 = vpack.c.b16 %v490, %v488
    %v609 = vpack.c.b16 %v493, %v491
    %v610 = vpack.c.b16 %v494, %v492
    %v611 = vpack.c.b16 %v497, %v495
    %v612 = vpack.c.b16 %v498, %v496
    %v613 = vpack.c.b16 %v501, %v499
    %v614 = vpack.c.b16 %v502, %v500
    %v615 = vpack.c.b16 %v505, %v503
    %v616 = vpack.c.b16 %v506, %v504
    %v617 = vpack.c.b16 %v509, %v507
    %v618 = vpack.c.b16 %v510, %v508
    %v619 = vpack.c.b16 %v513, %v511
    %v620 = vpack.c.b16 %v514, %v512
    %v621 = vpack.c.b16 %v517, %v515
    %v622 = vpack.c.b16 %v518, %v516
    %v623 = vpack.c.b16 %v521, %v519
    %v624 = vpack.c.b16 %v522, %v520
    %v625 = vpack.c.b16 %v525, %v523
    %v626 = vpack.c.b16 %v526, %v524
    %v627 = vpack.c.b16 %v529, %v527
    %v628 = vpack.c.b16 %v530, %v528
    %v629 = vpack.c.b16 %v533, %v531
    %v630 = vpack.c.b16 %v534, %v532
    %v631 = vpack.c.b16 %v537, %v535
    %v632 = vpack.c.b16 %v538, %v536
    %v633 = vpack.c.b16 %v541, %v539
    %v634 = vpack.c.b16 %v542, %v540
    %v635 = vpack.c.b16 %v545, %v543
    %v636 = vpack.c.b16 %v546, %v544
    %v637 = vpack.c.b16 %v549, %v547
    %v638 = vpack.c.b16 %v550, %v548
    %v639 = vpack.c.b16 %v553, %v551
    %v640 = vpack.c.b16 %v554, %v552
    %v641 = vpack.c.b16 %v557, %v555
    %v642 = vpack.c.b16 %v558, %v556
    %v643 = vpack.c.b16 %v561, %v559
    %v644 = vpack.c.b16 %v562, %v560
    %v645 = vpack.c.b16 %v565, %v563
    %v646 = vpack.c.b16 %v566, %v564
    %v647 = vpack.c.b16 %v569, %v567
    %v648 = vpack.c.b16 %v570, %v568
    %v649 = vpack.c.b16 %v573, %v571
    %v650 = vpack.c.b16 %v574, %v572
    %v651 = vpack.c.b16 %v577, %v575
    %v652 = vpack.c.b16 %v578, %v576
    %v653 = vpack.c.b16 %v581, %v579
    %v654 = vpack.c.b16 %v582, %v580
    %v655 = vpack.c.b16 %v585, %v583
    %v656 = vpack.c.b16 %v586, %v584
    %v657 = vpack.c.b16 %v589, %v587
    %v658 = vpack.c.b16 %v590, %v588
    %v659 = vpack.c.b16 %v593, %v591
    %v660 = vpack.c.b16 %v594, %v592
    %v661 = vpack.c.b16 %v597, %v595
    %v662 = vpack.c.b16 %v598, %v596
    %727 = vmatprep.subr.bf16.mxu0 %v600
    %728 = vmatpush1.bf16.msra.mxu0 %v599
    %729 = vmatprep.subr.bf16.mxu0 %v602
    %730 = vmatpush1.bf16.msra.mxu0 %v601
    %731 = vmatprep.subr.bf16.mxu0 %v604
    %732 = vmatpush1.bf16.msra.mxu0 %v603
    %733 = vmatprep.subr.bf16.mxu0 %v606
    %734 = vmatpush1.bf16.msra.mxu0 %v605
    %735 = vmatprep.subr.bf16.mxu0 %v608
    %736 = vmatpush1.bf16.msra.mxu0 %v607
    %737 = vmatprep.subr.bf16.mxu0 %v610
    %738 = vmatpush1.bf16.msra.mxu0 %v609
    %739 = vmatprep.subr.bf16.mxu0 %v612
    %740 = vmatpush1.bf16.msra.mxu0 %v611
    %741 = vmatprep.subr.bf16.mxu0 %v614
    %742 = vmatpush1.bf16.msra.mxu0 %v613
    %743 = vmatprep.subr.bf16.mxu0 %v616
    %744 = vmatpush1.bf16.msra.mxu0 %v615
    %745 = vmatprep.subr.bf16.mxu0 %v618
    %746 = vmatpush1.bf16.msra.mxu0 %v617
    %747 = vmatprep.subr.bf16.mxu0 %v620
    %748 = vmatpush1.bf16.msra.mxu0 %v619
    %749 = vmatprep.subr.bf16.mxu0 %v622
    %750 = vmatpush1.bf16.msra.mxu0 %v621
    %751 = vmatprep.subr.bf16.mxu0 %v624
    %752 = vmatpush1.bf16.msra.mxu0 %v623
    %753 = vmatprep.subr.bf16.mxu0 %v626
    %754 = vmatpush1.bf16.msra.mxu0 %v625
    %755 = vmatprep.subr.bf16.mxu0 %v628
    %756 = vmatpush1.bf16.msra.mxu0 %v627
    %757 = vmatprep.subr.bf16.mxu0 %v630
    %758 = vmatpush1.bf16.msra.mxu0 %v629
    %759 = vmatprep.mubr.bf16.mxu0 %v328
    %760 = vmatmul.mubr.bf16.gmra.mrb[0].mxu0 %v327
    %v761 = vpop.f32.mrb[0].mxu0
    %v762 = vadd.f32 %v400, %v761
    %v763 = vpop.f32.mrb[0].mxu0
    %v764 = vadd.f32 %v404, %v763
    %v765 = vpop.f32.mrb[0].mxu0
    %v766 = vpop.f32.mrb[0].mxu0
    %767 = vdwg.mxu0
    %768 = vmatprep.subr.bf16.mxu0 %v632
    %769 = vmatpush1.bf16.msra.mxu0 %v631
    %770 = vmatprep.subr.bf16.mxu0 %v634
    %771 = vmatpush1.bf16.msra.mxu0 %v633
    %772 = vmatprep.subr.bf16.mxu0 %v636
    %773 = vmatpush1.bf16.msra.mxu0 %v635
    %774 = vmatprep.subr.bf16.mxu0 %v638
    %775 = vmatpush1.bf16.msra.mxu0 %v637
    %776 = vmatprep.subr.bf16.mxu0 %v640
    %777 = vmatpush1.bf16.msra.mxu0 %v639
    %778 = vmatprep.subr.bf16.mxu0 %v642
    %779 = vmatpush1.bf16.msra.mxu0 %v641
    %780 = vmatprep.subr.bf16.mxu0 %v644
    %781 = vmatpush1.bf16.msra.mxu0 %v643
    %782 = vmatprep.subr.bf16.mxu0 %v646
    %783 = vmatpush1.bf16.msra.mxu0 %v645
    %784 = vmatprep.subr.bf16.mxu0 %v648
    %785 = vmatpush1.bf16.msra.mxu0 %v647
    %786 = vmatprep.subr.bf16.mxu0 %v650
    %787 = vmatpush1.bf16.msra.mxu0 %v649
    %788 = vmatprep.subr.bf16.mxu0 %v652
    %789 = vmatpush1.bf16.msra.mxu0 %v651
    %790 = vmatprep.subr.bf16.mxu0 %v654
    %791 = vmatpush1.bf16.msra.mxu0 %v653
    %792 = vmatprep.subr.bf16.mxu0 %v656
    %793 = vmatpush1.bf16.msra.mxu0 %v655
    %794 = vmatprep.subr.bf16.mxu0 %v658
    %795 = vmatpush1.bf16.msra.mxu0 %v657
    %796 = vmatprep.subr.bf16.mxu0 %v660
    %797 = vmatpush1.bf16.msra.mxu0 %v659
    %798 = vmatprep.subr.bf16.mxu0 %v662
    %799 = vmatpush1.bf16.msra.mxu0 %v661
    %800 = vmatprep.mubr.bf16.mxu0 %v330
    %801 = vmatmul.mubr.bf16.gmra.mrb[0].mxu0 %v329
    %v802 = vpop.f32.mrb[0].mxu0
    %v803 = vadd.f32 %v762, %v802
    %v804 = vpop.f32.mrb[0].mxu0
    %v805 = vadd.f32 %v764, %v804
    %v806 = vpop.f32.mrb[0].mxu0
    %v807 = vpop.f32.mrb[0].mxu0
    %808 = vdwg.mxu0
    %vm809 = vcmp.gt.f32.partialorder %v803, 0.0
    %vm810 = vcmp.gt.f32.partialorder %v805, 0.0
    %v811 = vmul.f32 %v803, 0.01
    %v812 = vmul.f32 %v805, 0.01
    %v813 = vsel %vm809, %v803, %v811
    %v814 = vsel %vm810, %v805, %v812
    %v815 = vpack.c.bf16 %v813, %v813
    %v816 = vpack.c.bf16 %v814, %v814
    %v817 = vld [vmem:[%s6] sm:$0xf]
    %v818 = vld [vmem:[%s6 + $0x4] sm:$0xf]
    %v819 = vld [vmem:[%s6 + $0x8] sm:$0xf]
    %v820 = vld [vmem:[%s6 + $0xc] sm:$0xf]
    %v821 = vld [vmem:[%s6 + $0x10] sm:$0xf]
    %v822 = vld [vmem:[%s6 + $0x14] sm:$0xf]
    %v823 = vld [vmem:[%s6 + $0x18] sm:$0xf]
    %v824 = vld [vmem:[%s6 + $0x1c] sm:$0xf]
    %v825 = vld [vmem:[%s6 + $0x20] sm:$0xf]
    %v826 = vld [vmem:[%s6 + $0x24] sm:$0xf]
    %v827 = vld [vmem:[%s6 + $0x28] sm:$0xf]
    %v828 = vld [vmem:[%s6 + $0x2c] sm:$0xf]
    %v829 = vld [vmem:[%s6 + $0x30] sm:$0xf]
    %v830 = vld [vmem:[%s6 + $0x34] sm:$0xf]
    %v831 = vld [vmem:[%s6 + $0x38] sm:$0xf]
    %v832 = vld [vmem:[%s6 + $0x3c] sm:$0xf]
    %v833 = vld [vmem:[%s6 + $0x40] sm:$0xf]
    %v834 = vld [vmem:[%s6 + $0x44] sm:$0xf]
    %v835 = vld [vmem:[%s6 + $0x48] sm:$0xf]
    %v836 = vld [vmem:[%s6 + $0x4c] sm:$0xf]
    %v837 = vld [vmem:[%s6 + $0x50] sm:$0xf]
    %v838 = vld [vmem:[%s6 + $0x54] sm:$0xf]
    %v839 = vld [vmem:[%s6 + $0x58] sm:$0xf]
    %v840 = vld [vmem:[%s6 + $0x5c] sm:$0xf]
    %v841 = vld [vmem:[%s6 + $0x60] sm:$0xf]
    %v842 = vld [vmem:[%s6 + $0x64] sm:$0xf]
    %v843 = vld [vmem:[%s6 + $0x68] sm:$0xf]
    %v844 = vld [vmem:[%s6 + $0x6c] sm:$0xf]
    %v845 = vld [vmem:[%s6 + $0x70] sm:$0xf]
    %v846 = vld [vmem:[%s6 + $0x74] sm:$0xf]
    %v847 = vld [vmem:[%s6 + $0x78] sm:$0xf]
    %v848 = vld [vmem:[%s6 + $0x7c] sm:$0xf]
    %v849 = vld [vmem:[%s7] sm:$0x1]
    %v851 = vlaneseq
    %v852 = vshrl.u32 %v851, 7
    %v853 = vsub.s32 0, %v852
    %v854 = vrot.slane %v849, %v853
    %v888 = vunpack.c.l.b16 %v817
    %v889 = vunpack.c.l.b16 %v818
    %v890 = vunpack.c.l.b16 %v819
    %v891 = vunpack.c.l.b16 %v820
    %v892 = vunpack.c.l.b16 %v821
    %v893 = vunpack.c.l.b16 %v822
    %v894 = vunpack.c.l.b16 %v823
    %v895 = vunpack.c.l.b16 %v824
    %v896 = vunpack.c.l.b16 %v825
    %v897 = vunpack.c.l.b16 %v826
    %v898 = vunpack.c.l.b16 %v827
    %v899 = vunpack.c.l.b16 %v828
    %v900 = vunpack.c.l.b16 %v829
    %v901 = vunpack.c.l.b16 %v830
    %v902 = vunpack.c.l.b16 %v831
    %v903 = vunpack.c.l.b16 %v832
    %v904 = vunpack.c.l.b16 %v833
    %v905 = vunpack.c.l.b16 %v834
    %v906 = vunpack.c.l.b16 %v835
    %v907 = vunpack.c.l.b16 %v836
    %v908 = vunpack.c.l.b16 %v837
    %v909 = vunpack.c.l.b16 %v838
    %v910 = vunpack.c.l.b16 %v839
    %v911 = vunpack.c.l.b16 %v840
    %v912 = vunpack.c.l.b16 %v841
    %v913 = vunpack.c.l.b16 %v842
    %v914 = vunpack.c.l.b16 %v843
    %v915 = vunpack.c.l.b16 %v844
    %v916 = vunpack.c.l.b16 %v845
    %v917 = vunpack.c.l.b16 %v846
    %v918 = vunpack.c.l.b16 %v847
    %v919 = vunpack.c.l.b16 %v848
    %v920 = vpack.c.b16 %v889, %v888
    %v921 = vpack.c.b16 %v891, %v890
    %v922 = vpack.c.b16 %v893, %v892
    %v923 = vpack.c.b16 %v895, %v894
    %v924 = vpack.c.b16 %v897, %v896
    %v925 = vpack.c.b16 %v899, %v898
    %v926 = vpack.c.b16 %v901, %v900
    %v927 = vpack.c.b16 %v903, %v902
    %v928 = vpack.c.b16 %v905, %v904
    %v929 = vpack.c.b16 %v907, %v906
    %v930 = vpack.c.b16 %v909, %v908
    %v931 = vpack.c.b16 %v911, %v910
    %v932 = vpack.c.b16 %v913, %v912
    %v933 = vpack.c.b16 %v915, %v914
    %v934 = vpack.c.b16 %v917, %v916
    %v935 = vpack.c.b16 %v919, %v918
    %952 = vmatprep.subr.bf16.mxu0 0
    %953 = vmatpush1.bf16.msra.mxu0 %v920
    %954 = vmatprep.subr.bf16.mxu0 0
    %955 = vmatpush1.bf16.msra.mxu0 %v921
    %956 = vmatprep.subr.bf16.mxu0 0
    %957 = vmatpush1.bf16.msra.mxu0 %v922
    %958 = vmatprep.subr.bf16.mxu0 0
    %959 = vmatpush1.bf16.msra.mxu0 %v923
    %960 = vmatprep.subr.bf16.mxu0 0
    %961 = vmatpush1.bf16.msra.mxu0 %v924
    %962 = vmatprep.subr.bf16.mxu0 0
    %963 = vmatpush1.bf16.msra.mxu0 %v925
    %964 = vmatprep.subr.bf16.mxu0 0
    %965 = vmatpush1.bf16.msra.mxu0 %v926
    %966 = vmatprep.subr.bf16.mxu0 0
    %967 = vmatpush1.bf16.msra.mxu0 %v927
    %968 = vmatprep.subr.bf16.mxu0 0
    %969 = vmatpush1.bf16.msra.mxu0 %v928
    %970 = vmatprep.subr.bf16.mxu0 0
    %971 = vmatpush1.bf16.msra.mxu0 %v929
    %972 = vmatprep.subr.bf16.mxu0 0
    %973 = vmatpush1.bf16.msra.mxu0 %v930
    %974 = vmatprep.subr.bf16.mxu0 0
    %975 = vmatpush1.bf16.msra.mxu0 %v931
    %976 = vmatprep.subr.bf16.mxu0 0
    %977 = vmatpush1.bf16.msra.mxu0 %v932
    %978 = vmatprep.subr.bf16.mxu0 0
    %979 = vmatpush1.bf16.msra.mxu0 %v933
    %980 = vmatprep.subr.bf16.mxu0 0
    %981 = vmatpush1.bf16.msra.mxu0 %v934
    %982 = vmatprep.subr.bf16.mxu0 0
    %983 = vmatpush1.bf16.msra.mxu0 %v935
    %984 = vmatprep.mubr.bf16.mxu0 %v816
    %985 = vmatmul.mubr.bf16.gmra.mrb[0].mxu0 %v815
    %v986 = vpop.f32.mrb[0].mxu0
    %v987 = vadd.f32 %v854, %v986
    %v988 = vpop.f32.mrb[0].mxu0
    %v989 = vpop.f32.mrb[0].mxu0
    %v990 = vpop.f32.mrb[0].mxu0
    %991 = vdwg.mxu0
    %v992 = vld [vmem:[%s1] sm:$0xff]
    %v993 = vmul.f32 %v987, 0.5
    %v994 = vmul.f32 %v993, 1.442695
    %v995 = vpow.pop %v994
    %997 = vrot.lane.b32.xlu0 %v995, 108
    %v998 = vpop.permute.xlu0 %997
    %v1000 = vmul.f32 %v992, %v998
    %v1001 = vadd.f32 %v987, %v1000
    %v1002 = vpack.c.bf16 %v1001, %v1001
    %v1003 = vld [vmem:[#allocation8] sm:$0xff]
    %v1004 = vld [vmem:[#allocation8 + $0x8] sm:$0xff]
    %v1005 = vld [vmem:[#allocation8 + $0x10] sm:$0x33]
    %v1006 = vld [vmem:[#allocation10] sm:$0x3]
    %v1008 = vlaneseq
    %v1009 = vshrl.u32 %v1008, 7
    %v1010 = vsub.s32 0, %v1009
    %v1011 = vrot.slane %v1006, %v1010
    %v1012 = vlaneseq
    %v1013 = vshrl.u32 %v1012, 7
    %v1014 = vsub.s32 1, %v1013
    %v1015 = vrot.slane %v1006, %v1014
    %v1021 = vunpack.c.l.b16 %v1003
    %v1022 = vunpack.c.h.b16 %v1003
    %v1023 = vunpack.c.l.b16 %v1004
    %v1024 = vunpack.c.h.b16 %v1004
    %v1025 = vunpack.c.l.b16 %v1005
    %v1026 = vunpack.c.h.b16 %v1005
    %v1027 = vpack.c.b16 %v1023, %v1021
    %v1028 = vpack.c.b16 %v1024, %v1022
    %v1029 = vpack.c.b16 %v1025, %v1025
    %v1030 = vpack.c.b16 %v1026, %v1026
    %vm1033 = vcmask 162816
    %v1035 = vsel %vm1033, %v1002, 0
    %vm1037 = vcmask 1041408
    %v1039 = vsel %vm1037, %v1029, 0
    %v1042 = vsel %vm1037, %v1030, 0
    %1044 = vmatprep.subr.bf16.mxu0 %v1028
    %1045 = vmatpush1.bf16.msra.mxu0 %v1027
    %1046 = vmatprep.subr.bf16.mxu0 %v1042
    %1047 = vmatpush1.bf16.msra.mxu0 %v1039
    %1048 = vmatprep.subr.bf16.mxu0 0
    %1049 = vmatpush1.bf16.msra.mxu0 0
    %1050 = vmatprep.subr.bf16.mxu0 0
    %1051 = vmatpush1.bf16.msra.mxu0 0
    %1052 = vmatprep.subr.bf16.mxu0 0
    %1053 = vmatpush1.bf16.msra.mxu0 0
    %1054 = vmatprep.subr.bf16.mxu0 0
    %1055 = vmatpush1.bf16.msra.mxu0 0
    %1056 = vmatprep.subr.bf16.mxu0 0
    %1057 = vmatpush1.bf16.msra.mxu0 0
    %1058 = vmatprep.subr.bf16.mxu0 0
    %1059 = vmatpush1.bf16.msra.mxu0 0
    %1060 = vmatprep.subr.bf16.mxu0 0
    %1061 = vmatpush1.bf16.msra.mxu0 0
    %1062 = vmatprep.subr.bf16.mxu0 0
    %1063 = vmatpush1.bf16.msra.mxu0 0
    %1064 = vmatprep.subr.bf16.mxu0 0
    %1065 = vmatpush1.bf16.msra.mxu0 0
    %1066 = vmatprep.subr.bf16.mxu0 0
    %1067 = vmatpush1.bf16.msra.mxu0 0
    %1068 = vmatprep.subr.bf16.mxu0 0
    %1069 = vmatpush1.bf16.msra.mxu0 0
    %1070 = vmatprep.subr.bf16.mxu0 0
    %1071 = vmatpush1.bf16.msra.mxu0 0
    %1072 = vmatprep.subr.bf16.mxu0 0
    %1073 = vmatpush1.bf16.msra.mxu0 0
    %1074 = vmatprep.subr.bf16.mxu0 0
    %1075 = vmatpush1.bf16.msra.mxu0 0
    %1076 = vmatprep.mubr.bf16.mxu0 0
    %1077 = vmatmul.mubr.bf16.gmra.mrb[0].mxu0 %v1035
    %v1078 = vpop.f32.mrb[0].mxu0
    %v1079 = vadd.f32 %v1011, %v1078
    %v1080 = vpop.f32.mrb[0].mxu0
    %v1081 = vadd.f32 %v1015, %v1080
    %v1082 = vpop.f32.mrb[0].mxu0
    %v1083 = vpop.f32.mrb[0].mxu0
    %1084 = vdwg.mxu0
    %vm1085 = vcmp.gt.f32.partialorder %v1079, 0.0
    %vm1086 = vcmp.gt.f32.partialorder %v1081, 0.0
    %v1087 = vmul.f32 %v1079, 0.01
    %v1088 = vmul.f32 %v1081, 0.01
    %v1089 = vsel %vm1085, %v1079, %v1087
    %v1090 = vsel %vm1086, %v1081, %v1088
    %v1091 = vadd.f32 %v1089, %v1090
    %1092 = vadd.xlane.f32.xlu0 %v1091
    %v1093 = vpop.xlane.xlu0 %1092
    %v1094 = vrcp.pop 256.0
    %v1095 = vmul.f32 %v1093, %v1094
    %v1096 = vmul.f32 %v1089, %v1089
    %v1097 = vmul.f32 %v1090, %v1090
    %v1098 = vadd.f32 %v1096, %v1097
    %1099 = vadd.xlane.f32.xlu0 %v1098
    %v1100 = vpop.xlane.xlu0 %1099
    %v1101 = vmul.f32 %v1100, %v1094
    %v1102 = vmul.f32 %v1095, %v1095
    %v1103 = vsub.f32 %v1101, %v1102
    %v1104 = vsub.f32 %v1089, %v1095
    %v1105 = vsub.f32 %v1090, %v1095
    %v1106 = vadd.f32 %v1103, 1e-05
    %v1107 = vrsqrt.pop %v1106
    %v1108 = vmul.f32 %v1104, %v1107
    %v1109 = vmul.f32 %v1105, %v1107
    %v1110 = vld [vmem:[#allocation11] sm:$0x3]
    %v1112 = vlaneseq
    %v1113 = vshrl.u32 %v1112, 7
    %v1114 = vsub.s32 0, %v1113
    %v1115 = vrot.slane %v1110, %v1114
    %v1116 = vlaneseq
    %v1117 = vshrl.u32 %v1116, 7
    %v1118 = vsub.s32 1, %v1117
    %v1119 = vrot.slane %v1110, %v1118
    %v1122 = vmul.f32 %v1108, %v1115
    %v1123 = vmul.f32 %v1109, %v1119
    %v1124 = vld [vmem:[#allocation13] sm:$0x3]
    %v1126 = vlaneseq
    %v1127 = vshrl.u32 %v1126, 7
    %v1128 = vsub.s32 0, %v1127
    %v1129 = vrot.slane %v1124, %v1128
    %v1130 = vlaneseq
    %v1131 = vshrl.u32 %v1130, 7
    %v1132 = vsub.s32 1, %v1131
    %v1133 = vrot.slane %v1124, %v1132
    %v1136 = vadd.f32 %v1122, %v1129
    %v1137 = vadd.f32 %v1123, %v1133
    %v1138 = vpack.c.bf16 %v1136, %v1136
    %v1139 = vpack.c.bf16 %v1137, %v1137
    %v1140 = vld [vmem:[%s12] sm:$0xff]
    %v1141 = vld [vmem:[%s12 + $0x8] sm:$0xff]
    %v1142 = vld [vmem:[%s12 + $0x10] sm:$0xff]
    %v1143 = vld [vmem:[%s12 + $0x18] sm:$0xff]
    %v1144 = vld [vmem:[%s12 + $0x20] sm:$0xff]
    %v1145 = vld [vmem:[%s12 + $0x28] sm:$0xff]
    %v1146 = vld [vmem:[%s12 + $0x30] sm:$0xff]
    %v1147 = vld [vmem:[%s12 + $0x38] sm:$0xff]
    %v1148 = vld [vmem:[%s12 + $0x40] sm:$0xff]
    %v1149 = vld [vmem:[%s12 + $0x48] sm:$0xff]
    %v1150 = vld [vmem:[%s12 + $0x50] sm:$0xff]
    %v1151 = vld [vmem:[%s12 + $0x58] sm:$0xff]
    %v1152 = vld [vmem:[%s12 + $0x60] sm:$0xff]
    %v1153 = vld [vmem:[%s12 + $0x68] sm:$0xff]
    %v1154 = vld [vmem:[%s12 + $0x70] sm:$0xff]
    %v1155 = vld [vmem:[%s12 + $0x78] sm:$0xff]
    %v1156 = vld [vmem:[%s12 + $0x80] sm:$0xff]
    %v1157 = vld [vmem:[%s12 + $0x88] sm:$0xff]
    %v1158 = vld [vmem:[%s12 + $0x90] sm:$0xff]
    %v1159 = vld [vmem:[%s12 + $0x98] sm:$0xff]
    %v1160 = vld [vmem:[%s12 + $0xa0] sm:$0xff]
    %v1161 = vld [vmem:[%s12 + $0xa8] sm:$0xff]
    %v1162 = vld [vmem:[%s12 + $0xb0] sm:$0xff]
    %v1163 = vld [vmem:[%s12 + $0xb8] sm:$0xff]
    %v1164 = vld [vmem:[%s12 + $0xc0] sm:$0xff]
    %v1165 = vld [vmem:[%s12 + $0xc8] sm:$0xff]
    %v1166 = vld [vmem:[%s12 + $0xd0] sm:$0xff]
    %v1167 = vld [vmem:[%s12 + $0xd8] sm:$0xff]
    %v1168 = vld [vmem:[%s12 + $0xe0] sm:$0xff]
    %v1169 = vld [vmem:[%s12 + $0xe8] sm:$0xff]
    %v1170 = vld [vmem:[%s12 + $0xf0] sm:$0xff]
    %v1171 = vld [vmem:[%s12 + $0xf8] sm:$0xff]
    %v1172 = vld [vmem:[%s12 + $0x100] sm:$0xff]
    %v1173 = vld [vmem:[%s12 + $0x108] sm:$0xff]
    %v1174 = vld [vmem:[%s12 + $0x110] sm:$0xff]
    %v1175 = vld [vmem:[%s12 + $0x118] sm:$0xff]
    %v1176 = vld [vmem:[%s12 + $0x120] sm:$0xff]
    %v1177 = vld [vmem:[%s12 + $0x128] sm:$0xff]
    %v1178 = vld [vmem:[%s12 + $0x130] sm:$0xff]
    %v1179 = vld [vmem:[%s12 + $0x138] sm:$0xff]
    %v1180 = vld [vmem:[%s12 + $0x140] sm:$0xff]
    %v1181 = vld [vmem:[%s12 + $0x148] sm:$0xff]
    %v1182 = vld [vmem:[%s12 + $0x150] sm:$0xff]
    %v1183 = vld [vmem:[%s12 + $0x158] sm:$0xff]
    %v1184 = vld [vmem:[%s12 + $0x160] sm:$0xff]
    %v1185 = vld [vmem:[%s12 + $0x168] sm:$0xff]
    %v1186 = vld [vmem:[%s12 + $0x170] sm:$0xff]
    %v1187 = vld [vmem:[%s12 + $0x178] sm:$0xff]
    %v1188 = vld [vmem:[%s12 + $0x180] sm:$0xff]
    %v1189 = vld [vmem:[%s12 + $0x188] sm:$0xff]
    %v1190 = vld [vmem:[%s12 + $0x190] sm:$0xff]
    %v1191 = vld [vmem:[%s12 + $0x198] sm:$0xff]
    %v1192 = vld [vmem:[%s12 + $0x1a0] sm:$0xff]
    %v1193 = vld [vmem:[%s12 + $0x1a8] sm:$0xff]
    %v1194 = vld [vmem:[%s12 + $0x1b0] sm:$0xff]
    %v1195 = vld [vmem:[%s12 + $0x1b8] sm:$0xff]
    %v1196 = vld [vmem:[%s12 + $0x1c0] sm:$0xff]
    %v1197 = vld [vmem:[%s12 + $0x1c8] sm:$0xff]
    %v1198 = vld [vmem:[%s12 + $0x1d0] sm:$0xff]
    %v1199 = vld [vmem:[%s12 + $0x1d8] sm:$0xff]
    %v1200 = vld [vmem:[%s12 + $0x1e0] sm:$0xff]
    %v1201 = vld [vmem:[%s12 + $0x1e8] sm:$0xff]
    %v1202 = vld [vmem:[%s12 + $0x1f0] sm:$0xff]
    %v1203 = vld [vmem:[%s12 + $0x1f8] sm:$0xff]
    %v1204 = vld [vmem:[#allocation14] sm:$0xf]
    %v1206 = vlaneseq
    %v1207 = vshrl.u32 %v1206, 7
    %v1208 = vsub.s32 0, %v1207
    %v1209 = vrot.slane %v1204, %v1208
    %v1210 = vlaneseq
    %v1211 = vshrl.u32 %v1210, 7
    %v1212 = vsub.s32 1, %v1211
    %v1213 = vrot.slane %v1204, %v1212
    %v1214 = vlaneseq
    %v1215 = vshrl.u32 %v1214, 7
    %v1216 = vsub.s32 2, %v1215
    %v1217 = vrot.slane %v1204, %v1216
    %v1218 = vlaneseq
    %v1219 = vshrl.u32 %v1218, 7
    %v1220 = vsub.s32 3, %v1219
    %v1221 = vrot.slane %v1204, %v1220
    %v1290 = vunpack.c.l.b16 %v1140
    %v1291 = vunpack.c.h.b16 %v1140
    %v1292 = vunpack.c.l.b16 %v1141
    %v1293 = vunpack.c.h.b16 %v1141
    %v1294 = vunpack.c.l.b16 %v1142
    %v1295 = vunpack.c.h.b16 %v1142
    %v1296 = vunpack.c.l.b16 %v1143
    %v1297 = vunpack.c.h.b16 %v1143
    %v1298 = vunpack.c.l.b16 %v1144
    %v1299 = vunpack.c.h.b16 %v1144
    %v1300 = vunpack.c.l.b16 %v1145
    %v1301 = vunpack.c.h.b16 %v1145
    %v1302 = vunpack.c.l.b16 %v1146
    %v1303 = vunpack.c.h.b16 %v1146
    %v1304 = vunpack.c.l.b16 %v1147
    %v1305 = vunpack.c.h.b16 %v1147
    %v1306 = vunpack.c.l.b16 %v1148
    %v1307 = vunpack.c.h.b16 %v1148
    %v1308 = vunpack.c.l.b16 %v1149
    %v1309 = vunpack.c.h.b16 %v1149
    %v1310 = vunpack.c.l.b16 %v1150
    %v1311 = vunpack.c.h.b16 %v1150
    %v1312 = vunpack.c.l.b16 %v1151
    %v1313 = vunpack.c.h.b16 %v1151
    %v1314 = vunpack.c.l.b16 %v1152
    %v1315 = vunpack.c.h.b16 %v1152
    %v1316 = vunpack.c.l.b16 %v1153
    %v1317 = vunpack.c.h.b16 %v1153
    %v1318 = vunpack.c.l.b16 %v1154
    %v1319 = vunpack.c.h.b16 %v1154
    %v1320 = vunpack.c.l.b16 %v1155
    %v1321 = vunpack.c.h.b16 %v1155
    %v1322 = vunpack.c.l.b16 %v1156
    %v1323 = vunpack.c.h.b16 %v1156
    %v1324 = vunpack.c.l.b16 %v1157
    %v1325 = vunpack.c.h.b16 %v1157
    %v1326 = vunpack.c.l.b16 %v1158
    %v1327 = vunpack.c.h.b16 %v1158
    %v1328 = vunpack.c.l.b16 %v1159
    %v1329 = vunpack.c.h.b16 %v1159
    %v1330 = vunpack.c.l.b16 %v1160
    %v1331 = vunpack.c.h.b16 %v1160
    %v1332 = vunpack.c.l.b16 %v1161
    %v1333 = vunpack.c.h.b16 %v1161
    %v1334 = vunpack.c.l.b16 %v1162
    %v1335 = vunpack.c.h.b16 %v1162
    %v1336 = vunpack.c.l.b16 %v1163
    %v1337 = vunpack.c.h.b16 %v1163
    %v1338 = vunpack.c.l.b16 %v1164
    %v1339 = vunpack.c.h.b16 %v1164
    %v1340 = vunpack.c.l.b16 %v1165
    %v1341 = vunpack.c.h.b16 %v1165
    %v1342 = vunpack.c.l.b16 %v1166
    %v1343 = vunpack.c.h.b16 %v1166
    %v1344 = vunpack.c.l.b16 %v1167
    %v1345 = vunpack.c.h.b16 %v1167
    %v1346 = vunpack.c.l.b16 %v1168
    %v1347 = vunpack.c.h.b16 %v1168
    %v1348 = vunpack.c.l.b16 %v1169
    %v1349 = vunpack.c.h.b16 %v1169
    %v1350 = vunpack.c.l.b16 %v1170
    %v1351 = vunpack.c.h.b16 %v1170
    %v1352 = vunpack.c.l.b16 %v1171
    %v1353 = vunpack.c.h.b16 %v1171
    %v1354 = vunpack.c.l.b16 %v1172
    %v1355 = vunpack.c.h.b16 %v1172
    %v1356 = vunpack.c.l.b16 %v1173
    %v1357 = vunpack.c.h.b16 %v1173
    %v1358 = vunpack.c.l.b16 %v1174
    %v1359 = vunpack.c.h.b16 %v1174
    %v1360 = vunpack.c.l.b16 %v1175
    %v1361 = vunpack.c.h.b16 %v1175
    %v1362 = vunpack.c.l.b16 %v1176
    %v1363 = vunpack.c.h.b16 %v1176
    %v1364 = vunpack.c.l.b16 %v1177
    %v1365 = vunpack.c.h.b16 %v1177
    %v1366 = vunpack.c.l.b16 %v1178
    %v1367 = vunpack.c.h.b16 %v1178
    %v1368 = vunpack.c.l.b16 %v1179
    %v1369 = vunpack.c.h.b16 %v1179
    %v1370 = vunpack.c.l.b16 %v1180
    %v1371 = vunpack.c.h.b16 %v1180
    %v1372 = vunpack.c.l.b16 %v1181
    %v1373 = vunpack.c.h.b16 %v1181
    %v1374 = vunpack.c.l.b16 %v1182
    %v1375 = vunpack.c.h.b16 %v1182
    %v1376 = vunpack.c.l.b16 %v1183
    %v1377 = vunpack.c.h.b16 %v1183
    %v1378 = vunpack.c.l.b16 %v1184
    %v1379 = vunpack.c.h.b16 %v1184
    %v1380 = vunpack.c.l.b16 %v1185
    %v1381 = vunpack.c.h.b16 %v1185
    %v1382 = vunpack.c.l.b16 %v1186
    %v1383 = vunpack.c.h.b16 %v1186
    %v1384 = vunpack.c.l.b16 %v1187
    %v1385 = vunpack.c.h.b16 %v1187
    %v1386 = vunpack.c.l.b16 %v1188
    %v1387 = vunpack.c.h.b16 %v1188
    %v1388 = vunpack.c.l.b16 %v1189
    %v1389 = vunpack.c.h.b16 %v1189
    %v1390 = vunpack.c.l.b16 %v1190
    %v1391 = vunpack.c.h.b16 %v1190
    %v1392 = vunpack.c.l.b16 %v1191
    %v1393 = vunpack.c.h.b16 %v1191
    %v1394 = vunpack.c.l.b16 %v1192
    %v1395 = vunpack.c.h.b16 %v1192
    %v1396 = vunpack.c.l.b16 %v1193
    %v1397 = vunpack.c.h.b16 %v1193
    %v1398 = vunpack.c.l.b16 %v1194
    %v1399 = vunpack.c.h.b16 %v1194
    %v1400 = vunpack.c.l.b16 %v1195
    %v1401 = vunpack.c.h.b16 %v1195
    %v1402 = vunpack.c.l.b16 %v1196
    %v1403 = vunpack.c.h.b16 %v1196
    %v1404 = vunpack.c.l.b16 %v1197
    %v1405 = vunpack.c.h.b16 %v1197
    %v1406 = vunpack.c.l.b16 %v1198
    %v1407 = vunpack.c.h.b16 %v1198
    %v1408 = vunpack.c.l.b16 %v1199
    %v1409 = vunpack.c.h.b16 %v1199
    %v1410 = vunpack.c.l.b16 %v1200
    %v1411 = vunpack.c.h.b16 %v1200
    %v1412 = vunpack.c.l.b16 %v1201
    %v1413 = vunpack.c.h.b16 %v1201
    %v1414 = vunpack.c.l.b16 %v1202
    %v1415 = vunpack.c.h.b16 %v1202
    %v1416 = vunpack.c.l.b16 %v1203
    %v1417 = vunpack.c.h.b16 %v1203
    %v1418 = vpack.c.b16 %v1294, %v1290
    %v1419 = vpack.c.b16 %v1295, %v1291
    %v1420 = vpack.c.b16 %v1296, %v1292
    %v1421 = vpack.c.b16 %v1297, %v1293
    %v1422 = vpack.c.b16 %v1302, %v1298
    %v1423 = vpack.c.b16 %v1303, %v1299
    %v1424 = vpack.c.b16 %v1304, %v1300
    %v1425 = vpack.c.b16 %v1305, %v1301
    %v1426 = vpack.c.b16 %v1310, %v1306
    %v1427 = vpack.c.b16 %v1311, %v1307
    %v1428 = vpack.c.b16 %v1312, %v1308
    %v1429 = vpack.c.b16 %v1313, %v1309
    %v1430 = vpack.c.b16 %v1318, %v1314
    %v1431 = vpack.c.b16 %v1319, %v1315
    %v1432 = vpack.c.b16 %v1320, %v1316
    %v1433 = vpack.c.b16 %v1321, %v1317
    %v1434 = vpack.c.b16 %v1326, %v1322
    %v1435 = vpack.c.b16 %v1327, %v1323
    %v1436 = vpack.c.b16 %v1328, %v1324
    %v1437 = vpack.c.b16 %v1329, %v1325
    %v1438 = vpack.c.b16 %v1334, %v1330
    %v1439 = vpack.c.b16 %v1335, %v1331
    %v1440 = vpack.c.b16 %v1336, %v1332
    %v1441 = vpack.c.b16 %v1337, %v1333
    %v1442 = vpack.c.b16 %v1342, %v1338
    %v1443 = vpack.c.b16 %v1343, %v1339
    %v1444 = vpack.c.b16 %v1344, %v1340
    %v1445 = vpack.c.b16 %v1345, %v1341
    %v1446 = vpack.c.b16 %v1350, %v1346
    %v1447 = vpack.c.b16 %v1351, %v1347
    %v1448 = vpack.c.b16 %v1352, %v1348
    %v1449 = vpack.c.b16 %v1353, %v1349
    %v1450 = vpack.c.b16 %v1358, %v1354
    %v1451 = vpack.c.b16 %v1359, %v1355
    %v1452 = vpack.c.b16 %v1360, %v1356
    %v1453 = vpack.c.b16 %v1361, %v1357
    %v1454 = vpack.c.b16 %v1366, %v1362
    %v1455 = vpack.c.b16 %v1367, %v1363
    %v1456 = vpack.c.b16 %v1368, %v1364
    %v1457 = vpack.c.b16 %v1369, %v1365
    %v1458 = vpack.c.b16 %v1374, %v1370
    %v1459 = vpack.c.b16 %v1375, %v1371
    %v1460 = vpack.c.b16 %v1376, %v1372
    %v1461 = vpack.c.b16 %v1377, %v1373
    %v1462 = vpack.c.b16 %v1382, %v1378
    %v1463 = vpack.c.b16 %v1383, %v1379
    %v1464 = vpack.c.b16 %v1384, %v1380
    %v1465 = vpack.c.b16 %v1385, %v1381
    %v1466 = vpack.c.b16 %v1390, %v1386
    %v1467 = vpack.c.b16 %v1391, %v1387
    %v1468 = vpack.c.b16 %v1392, %v1388
    %v1469 = vpack.c.b16 %v1393, %v1389
    %v1470 = vpack.c.b16 %v1398, %v1394
    %v1471 = vpack.c.b16 %v1399, %v1395
    %v1472 = vpack.c.b16 %v1400, %v1396
    %v1473 = vpack.c.b16 %v1401, %v1397
    %v1474 = vpack.c.b16 %v1406, %v1402
    %v1475 = vpack.c.b16 %v1407, %v1403
    %v1476 = vpack.c.b16 %v1408, %v1404
    %v1477 = vpack.c.b16 %v1409, %v1405
    %v1478 = vpack.c.b16 %v1414, %v1410
    %v1479 = vpack.c.b16 %v1415, %v1411
    %v1480 = vpack.c.b16 %v1416, %v1412
    %v1481 = vpack.c.b16 %v1417, %v1413
    %1546 = vmatprep.subr.bf16.mxu0 %v1419
    %1547 = vmatpush1.bf16.msra.mxu0 %v1418
    %1548 = vmatprep.subr.bf16.mxu0 %v1423
    %1549 = vmatpush1.bf16.msra.mxu0 %v1422
    %1550 = vmatprep.subr.bf16.mxu0 %v1427
    %1551 = vmatpush1.bf16.msra.mxu0 %v1426
    %1552 = vmatprep.subr.bf16.mxu0 %v1431
    %1553 = vmatpush1.bf16.msra.mxu0 %v1430
    %1554 = vmatprep.subr.bf16.mxu0 %v1435
    %1555 = vmatpush1.bf16.msra.mxu0 %v1434
    %1556 = vmatprep.subr.bf16.mxu0 %v1439
    %1557 = vmatpush1.bf16.msra.mxu0 %v1438
    %1558 = vmatprep.subr.bf16.mxu0 %v1443
    %1559 = vmatpush1.bf16.msra.mxu0 %v1442
    %1560 = vmatprep.subr.bf16.mxu0 %v1447
    %1561 = vmatpush1.bf16.msra.mxu0 %v1446
    %1562 = vmatprep.subr.bf16.mxu0 %v1451
    %1563 = vmatpush1.bf16.msra.mxu0 %v1450
    %1564 = vmatprep.subr.bf16.mxu0 %v1455
    %1565 = vmatpush1.bf16.msra.mxu0 %v1454
    %1566 = vmatprep.subr.bf16.mxu0 %v1459
    %1567 = vmatpush1.bf16.msra.mxu0 %v1458
    %1568 = vmatprep.subr.bf16.mxu0 %v1463
    %1569 = vmatpush1.bf16.msra.mxu0 %v1462
    %1570 = vmatprep.subr.bf16.mxu0 %v1467
    %1571 = vmatpush1.bf16.msra.mxu0 %v1466
    %1572 = vmatprep.subr.bf16.mxu0 %v1471
    %1573 = vmatpush1.bf16.msra.mxu0 %v1470
    %1574 = vmatprep.subr.bf16.mxu0 %v1475
    %1575 = vmatpush1.bf16.msra.mxu0 %v1474
    %1576 = vmatprep.subr.bf16.mxu0 %v1479
    %1577 = vmatpush1.bf16.msra.mxu0 %v1478
    %1578 = vmatprep.mubr.bf16.mxu0 %v1139
    %1579 = vmatmul.mubr.bf16.gmra.mrb[0].mxu0 %v1138
    %v1580 = vpop.f32.mrb[0].mxu0
    %v1581 = vadd.f32 %v1209, %v1580
    %v1582 = vpop.f32.mrb[0].mxu0
    %v1583 = vadd.f32 %v1213, %v1582
    %v1584 = vpop.f32.mrb[0].mxu0
    %v1585 = vpop.f32.mrb[0].mxu0
    %1586 = vdwg.mxu0
    %1587 = vmatprep.subr.bf16.mxu0 %v1421
    %1588 = vmatpush1.bf16.msra.mxu0 %v1420
    %1589 = vmatprep.subr.bf16.mxu0 %v1425
    %1590 = vmatpush1.bf16.msra.mxu0 %v1424
    %1591 = vmatprep.subr.bf16.mxu0 %v1429
    %1592 = vmatpush1.bf16.msra.mxu0 %v1428
    %1593 = vmatprep.subr.bf16.mxu0 %v1433
    %1594 = vmatpush1.bf16.msra.mxu0 %v1432
    %1595 = vmatprep.subr.bf16.mxu0 %v1437
    %1596 = vmatpush1.bf16.msra.mxu0 %v1436
    %1597 = vmatprep.subr.bf16.mxu0 %v1441
    %1598 = vmatpush1.bf16.msra.mxu0 %v1440
    %1599 = vmatprep.subr.bf16.mxu0 %v1445
    %1600 = vmatpush1.bf16.msra.mxu0 %v1444
    %1601 = vmatprep.subr.bf16.mxu0 %v1449
    %1602 = vmatpush1.bf16.msra.mxu0 %v1448
    %1603 = vmatprep.subr.bf16.mxu0 %v1453
    %1604 = vmatpush1.bf16.msra.mxu0 %v1452
    %1605 = vmatprep.subr.bf16.mxu0 %v1457
    %1606 = vmatpush1.bf16.msra.mxu0 %v1456
    %1607 = vmatprep.subr.bf16.mxu0 %v1461
    %1608 = vmatpush1.bf16.msra.mxu0 %v1460
    %1609 = vmatprep.subr.bf16.mxu0 %v1465
    %1610 = vmatpush1.bf16.msra.mxu0 %v1464
    %1611 = vmatprep.subr.bf16.mxu0 %v1469
    %1612 = vmatpush1.bf16.msra.mxu0 %v1468
    %1613 = vmatprep.subr.bf16.mxu0 %v1473
    %1614 = vmatpush1.bf16.msra.mxu0 %v1472
    %1615 = vmatprep.subr.bf16.mxu0 %v1477
    %1616 = vmatpush1.bf16.msra.mxu0 %v1476
    %1617 = vmatprep.subr.bf16.mxu0 %v1481
    %1618 = vmatpush1.bf16.msra.mxu0 %v1480
    %1619 = vmatprep.mubr.bf16.mxu0 %v1139
    %1620 = vmatmul.mubr.bf16.gmra.mrb[0].mxu0 %v1138
    %v1621 = vpop.f32.mrb[0].mxu0
    %v1622 = vadd.f32 %v1217, %v1621
    %v1623 = vpop.f32.mrb[0].mxu0
    %v1624 = vadd.f32 %v1221, %v1623
    %v1625 = vpop.f32.mrb[0].mxu0
    %v1626 = vpop.f32.mrb[0].mxu0
    %1627 = vdwg.mxu0
    %vm1628 = vcmp.gt.f32.partialorder %v1581, 0.0
    %vm1629 = vcmp.gt.f32.partialorder %v1583, 0.0
    %vm1630 = vcmp.gt.f32.partialorder %v1622, 0.0
    %vm1631 = vcmp.gt.f32.partialorder %v1624, 0.0
    %v1632 = vmul.f32 %v1581, 0.01
    %v1633 = vmul.f32 %v1583, 0.01
    %v1634 = vmul.f32 %v1622, 0.01
    %v1635 = vmul.f32 %v1624, 0.01
    %v1636 = vsel %vm1628, %v1581, %v1632
    %v1637 = vsel %vm1629, %v1583, %v1633
    %v1638 = vsel %vm1630, %v1622, %v1634
    %v1639 = vsel %vm1631, %v1624, %v1635
    %v1640 = vpack.c.bf16 %v1636, %v1636
    %v1641 = vpack.c.bf16 %v1637, %v1637
    %v1642 = vpack.c.bf16 %v1638, %v1638
    %v1643 = vpack.c.bf16 %v1639, %v1639
    %v1644 = vld [vmem:[%s14] sm:$0xf]
    %v1645 = vld [vmem:[%s14 + $0x4] sm:$0xf]
    %v1646 = vld [vmem:[%s14 + $0x8] sm:$0xf]
    %v1647 = vld [vmem:[%s14 + $0xc] sm:$0xf]
    %v1648 = vld [vmem:[%s14 + $0x10] sm:$0xf]
    %v1649 = vld [vmem:[%s14 + $0x14] sm:$0xf]
    %v1650 = vld [vmem:[%s14 + $0x18] sm:$0xf]
    %v1651 = vld [vmem:[%s14 + $0x1c] sm:$0xf]
    %v1652 = vld [vmem:[%s14 + $0x20] sm:$0xf]
    %v1653 = vld [vmem:[%s14 + $0x24] sm:$0xf]
    %v1654 = vld [vmem:[%s14 + $0x28] sm:$0xf]
    %v1655 = vld [vmem:[%s14 + $0x2c] sm:$0xf]
    %v1656 = vld [vmem:[%s14 + $0x30] sm:$0xf]
    %v1657 = vld [vmem:[%s14 + $0x34] sm:$0xf]
    %v1658 = vld [vmem:[%s14 + $0x38] sm:$0xf]
    %v1659 = vld [vmem:[%s14 + $0x3c] sm:$0xf]
    %v1660 = vld [vmem:[%s14 + $0x40] sm:$0xf]
    %v1661 = vld [vmem:[%s14 + $0x44] sm:$0xf]
    %v1662 = vld [vmem:[%s14 + $0x48] sm:$0xf]
    %v1663 = vld [vmem:[%s14 + $0x4c] sm:$0xf]
    %v1664 = vld [vmem:[%s14 + $0x50] sm:$0xf]
    %v1665 = vld [vmem:[%s14 + $0x54] sm:$0xf]
    %v1666 = vld [vmem:[%s14 + $0x58] sm:$0xf]
    %v1667 = vld [vmem:[%s14 + $0x5c] sm:$0xf]
    %v1668 = vld [vmem:[%s14 + $0x60] sm:$0xf]
    %v1669 = vld [vmem:[%s14 + $0x64] sm:$0xf]
    %v1670 = vld [vmem:[%s14 + $0x68] sm:$0xf]
    %v1671 = vld [vmem:[%s14 + $0x6c] sm:$0xf]
    %v1672 = vld [vmem:[%s14 + $0x70] sm:$0xf]
    %v1673 = vld [vmem:[%s14 + $0x74] sm:$0xf]
    %v1674 = vld [vmem:[%s14 + $0x78] sm:$0xf]
    %v1675 = vld [vmem:[%s14 + $0x7c] sm:$0xf]
    %v1676 = vld [vmem:[%s14 + $0x80] sm:$0xf]
    %v1677 = vld [vmem:[%s14 + $0x84] sm:$0xf]
    %v1678 = vld [vmem:[%s14 + $0x88] sm:$0xf]
    %v1679 = vld [vmem:[%s14 + $0x8c] sm:$0xf]
    %v1680 = vld [vmem:[%s14 + $0x90] sm:$0xf]
    %v1681 = vld [vmem:[%s14 + $0x94] sm:$0xf]
    %v1682 = vld [vmem:[%s14 + $0x98] sm:$0xf]
    %v1683 = vld [vmem:[%s14 + $0x9c] sm:$0xf]
    %v1684 = vld [vmem:[%s14 + $0xa0] sm:$0xf]
    %v1685 = vld [vmem:[%s14 + $0xa4] sm:$0xf]
    %v1686 = vld [vmem:[%s14 + $0xa8] sm:$0xf]
    %v1687 = vld [vmem:[%s14 + $0xac] sm:$0xf]
    %v1688 = vld [vmem:[%s14 + $0xb0] sm:$0xf]
    %v1689 = vld [vmem:[%s14 + $0xb4] sm:$0xf]
    %v1690 = vld [vmem:[%s14 + $0xb8] sm:$0xf]
    %v1691 = vld [vmem:[%s14 + $0xbc] sm:$0xf]
    %v1692 = vld [vmem:[%s14 + $0xc0] sm:$0xf]
    %v1693 = vld [vmem:[%s14 + $0xc4] sm:$0xf]
    %v1694 = vld [vmem:[%s14 + $0xc8] sm:$0xf]
    %v1695 = vld [vmem:[%s14 + $0xcc] sm:$0xf]
    %v1696 = vld [vmem:[%s14 + $0xd0] sm:$0xf]
    %v1697 = vld [vmem:[%s14 + $0xd4] sm:$0xf]
    %v1698 = vld [vmem:[%s14 + $0xd8] sm:$0xf]
    %v1699 = vld [vmem:[%s14 + $0xdc] sm:$0xf]
    %v1700 = vld [vmem:[%s14 + $0xe0] sm:$0xf]
    %v1701 = vld [vmem:[%s14 + $0xe4] sm:$0xf]
    %v1702 = vld [vmem:[%s14 + $0xe8] sm:$0xf]
    %v1703 = vld [vmem:[%s14 + $0xec] sm:$0xf]
    %v1704 = vld [vmem:[%s14 + $0xf0] sm:$0xf]
    %v1705 = vld [vmem:[%s14 + $0xf4] sm:$0xf]
    %v1706 = vld [vmem:[%s14 + $0xf8] sm:$0xf]
    %v1707 = vld [vmem:[%s14 + $0xfc] sm:$0xf]
    %v1708 = vld [vmem:[%s15] sm:$0x1]
    %v1710 = vlaneseq
    %v1711 = vshrl.u32 %v1710, 7
    %v1712 = vsub.s32 0, %v1711
    %v1713 = vrot.slane %v1708, %v1712
    %v1779 = vunpack.c.l.b16 %v1644
    %v1780 = vunpack.c.l.b16 %v1645
    %v1781 = vunpack.c.l.b16 %v1646
    %v1782 = vunpack.c.l.b16 %v1647
    %v1783 = vunpack.c.l.b16 %v1648
    %v1784 = vunpack.c.l.b16 %v1649
    %v1785 = vunpack.c.l.b16 %v1650
    %v1786 = vunpack.c.l.b16 %v1651
    %v1787 = vunpack.c.l.b16 %v1652
    %v1788 = vunpack.c.l.b16 %v1653
    %v1789 = vunpack.c.l.b16 %v1654
    %v1790 = vunpack.c.l.b16 %v1655
    %v1791 = vunpack.c.l.b16 %v1656
    %v1792 = vunpack.c.l.b16 %v1657
    %v1793 = vunpack.c.l.b16 %v1658
    %v1794 = vunpack.c.l.b16 %v1659
    %v1795 = vunpack.c.l.b16 %v1660
    %v1796 = vunpack.c.l.b16 %v1661
    %v1797 = vunpack.c.l.b16 %v1662
    %v1798 = vunpack.c.l.b16 %v1663
    %v1799 = vunpack.c.l.b16 %v1664
    %v1800 = vunpack.c.l.b16 %v1665
    %v1801 = vunpack.c.l.b16 %v1666
    %v1802 = vunpack.c.l.b16 %v1667
    %v1803 = vunpack.c.l.b16 %v1668
    %v1804 = vunpack.c.l.b16 %v1669
    %v1805 = vunpack.c.l.b16 %v1670
    %v1806 = vunpack.c.l.b16 %v1671
    %v1807 = vunpack.c.l.b16 %v1672
    %v1808 = vunpack.c.l.b16 %v1673
    %v1809 = vunpack.c.l.b16 %v1674
    %v1810 = vunpack.c.l.b16 %v1675
    %v1811 = vunpack.c.l.b16 %v1676
    %v1812 = vunpack.c.l.b16 %v1677
    %v1813 = vunpack.c.l.b16 %v1678
    %v1814 = vunpack.c.l.b16 %v1679
    %v1815 = vunpack.c.l.b16 %v1680
    %v1816 = vunpack.c.l.b16 %v1681
    %v1817 = vunpack.c.l.b16 %v1682
    %v1818 = vunpack.c.l.b16 %v1683
    %v1819 = vunpack.c.l.b16 %v1684
    %v1820 = vunpack.c.l.b16 %v1685
    %v1821 = vunpack.c.l.b16 %v1686
    %v1822 = vunpack.c.l.b16 %v1687
    %v1823 = vunpack.c.l.b16 %v1688
    %v1824 = vunpack.c.l.b16 %v1689
    %v1825 = vunpack.c.l.b16 %v1690
    %v1826 = vunpack.c.l.b16 %v1691
    %v1827 = vunpack.c.l.b16 %v1692
    %v1828 = vunpack.c.l.b16 %v1693
    %v1829 = vunpack.c.l.b16 %v1694
    %v1830 = vunpack.c.l.b16 %v1695
    %v1831 = vunpack.c.l.b16 %v1696
    %v1832 = vunpack.c.l.b16 %v1697
    %v1833 = vunpack.c.l.b16 %v1698
    %v1834 = vunpack.c.l.b16 %v1699
    %v1835 = vunpack.c.l.b16 %v1700
    %v1836 = vunpack.c.l.b16 %v1701
    %v1837 = vunpack.c.l.b16 %v1702
    %v1838 = vunpack.c.l.b16 %v1703
    %v1839 = vunpack.c.l.b16 %v1704
    %v1840 = vunpack.c.l.b16 %v1705
    %v1841 = vunpack.c.l.b16 %v1706
    %v1842 = vunpack.c.l.b16 %v1707
    %v1843 = vpack.c.b16 %v1780, %v1779
    %v1844 = vpack.c.b16 %v1782, %v1781
    %v1845 = vpack.c.b16 %v1784, %v1783
    %v1846 = vpack.c.b16 %v1786, %v1785
    %v1847 = vpack.c.b16 %v1788, %v1787
    %v1848 = vpack.c.b16 %v1790, %v1789
    %v1849 = vpack.c.b16 %v1792, %v1791
    %v1850 = vpack.c.b16 %v1794, %v1793
    %v1851 = vpack.c.b16 %v1796, %v1795
    %v1852 = vpack.c.b16 %v1798, %v1797
    %v1853 = vpack.c.b16 %v1800, %v1799
    %v1854 = vpack.c.b16 %v1802, %v1801
    %v1855 = vpack.c.b16 %v1804, %v1803
    %v1856 = vpack.c.b16 %v1806, %v1805
    %v1857 = vpack.c.b16 %v1808, %v1807
    %v1858 = vpack.c.b16 %v1810, %v1809
    %v1859 = vpack.c.b16 %v1812, %v1811
    %v1860 = vpack.c.b16 %v1814, %v1813
    %v1861 = vpack.c.b16 %v1816, %v1815
    %v1862 = vpack.c.b16 %v1818, %v1817
    %v1863 = vpack.c.b16 %v1820, %v1819
    %v1864 = vpack.c.b16 %v1822, %v1821
    %v1865 = vpack.c.b16 %v1824, %v1823
    %v1866 = vpack.c.b16 %v1826, %v1825
    %v1867 = vpack.c.b16 %v1828, %v1827
    %v1868 = vpack.c.b16 %v1830, %v1829
    %v1869 = vpack.c.b16 %v1832, %v1831
    %v1870 = vpack.c.b16 %v1834, %v1833
    %v1871 = vpack.c.b16 %v1836, %v1835
    %v1872 = vpack.c.b16 %v1838, %v1837
    %v1873 = vpack.c.b16 %v1840, %v1839
    %v1874 = vpack.c.b16 %v1842, %v1841
    %1907 = vmatprep.subr.bf16.mxu0 0
    %1908 = vmatpush1.bf16.msra.mxu0 %v1843
    %1909 = vmatprep.subr.bf16.mxu0 0
    %1910 = vmatpush1.bf16.msra.mxu0 %v1844
    %1911 = vmatprep.subr.bf16.mxu0 0
    %1912 = vmatpush1.bf16.msra.mxu0 %v1845
    %1913 = vmatprep.subr.bf16.mxu0 0
    %1914 = vmatpush1.bf16.msra.mxu0 %v1846
    %1915 = vmatprep.subr.bf16.mxu0 0
    %1916 = vmatpush1.bf16.msra.mxu0 %v1847
    %1917 = vmatprep.subr.bf16.mxu0 0
    %1918 = vmatpush1.bf16.msra.mxu0 %v1848
    %1919 = vmatprep.subr.bf16.mxu0 0
    %1920 = vmatpush1.bf16.msra.mxu0 %v1849
    %1921 = vmatprep.subr.bf16.mxu0 0
    %1922 = vmatpush1.bf16.msra.mxu0 %v1850
    %1923 = vmatprep.subr.bf16.mxu0 0
    %1924 = vmatpush1.bf16.msra.mxu0 %v1851
    %1925 = vmatprep.subr.bf16.mxu0 0
    %1926 = vmatpush1.bf16.msra.mxu0 %v1852
    %1927 = vmatprep.subr.bf16.mxu0 0
    %1928 = vmatpush1.bf16.msra.mxu0 %v1853
    %1929 = vmatprep.subr.bf16.mxu0 0
    %1930 = vmatpush1.bf16.msra.mxu0 %v1854
    %1931 = vmatprep.subr.bf16.mxu0 0
    %1932 = vmatpush1.bf16.msra.mxu0 %v1855
    %1933 = vmatprep.subr.bf16.mxu0 0
    %1934 = vmatpush1.bf16.msra.mxu0 %v1856
    %1935 = vmatprep.subr.bf16.mxu0 0
    %1936 = vmatpush1.bf16.msra.mxu0 %v1857
    %1937 = vmatprep.subr.bf16.mxu0 0
    %1938 = vmatpush1.bf16.msra.mxu0 %v1858
    %1939 = vmatprep.mubr.bf16.mxu0 %v1641
    %1940 = vmatmul.mubr.bf16.gmra.mrb[0].mxu0 %v1640
    %v1941 = vpop.f32.mrb[0].mxu0
    %v1942 = vadd.f32 %v1713, %v1941
    %v1943 = vpop.f32.mrb[0].mxu0
    %v1944 = vpop.f32.mrb[0].mxu0
    %v1945 = vpop.f32.mrb[0].mxu0
    %1946 = vdwg.mxu0
    %1947 = vmatprep.subr.bf16.mxu0 0
    %1948 = vmatpush1.bf16.msra.mxu0 %v1859
    %1949 = vmatprep.subr.bf16.mxu0 0
    %1950 = vmatpush1.bf16.msra.mxu0 %v1860
    %1951 = vmatprep.subr.bf16.mxu0 0
    %1952 = vmatpush1.bf16.msra.mxu0 %v1861
    %1953 = vmatprep.subr.bf16.mxu0 0
    %1954 = vmatpush1.bf16.msra.mxu0 %v1862
    %1955 = vmatprep.subr.bf16.mxu0 0
    %1956 = vmatpush1.bf16.msra.mxu0 %v1863
    %1957 = vmatprep.subr.bf16.mxu0 0
    %1958 = vmatpush1.bf16.msra.mxu0 %v1864
    %1959 = vmatprep.subr.bf16.mxu0 0
    %1960 = vmatpush1.bf16.msra.mxu0 %v1865
    %1961 = vmatprep.subr.bf16.mxu0 0
    %1962 = vmatpush1.bf16.msra.mxu0 %v1866
    %1963 = vmatprep.subr.bf16.mxu0 0
    %1964 = vmatpush1.bf16.msra.mxu0 %v1867
    %1965 = vmatprep.subr.bf16.mxu0 0
    %1966 = vmatpush1.bf16.msra.mxu0 %v1868
    %1967 = vmatprep.subr.bf16.mxu0 0
    %1968 = vmatpush1.bf16.msra.mxu0 %v1869
    %1969 = vmatprep.subr.bf16.mxu0 0
    %1970 = vmatpush1.bf16.msra.mxu0 %v1870
    %1971 = vmatprep.subr.bf16.mxu0 0
    %1972 = vmatpush1.bf16.msra.mxu0 %v1871
    %1973 = vmatprep.subr.bf16.mxu0 0
    %1974 = vmatpush1.bf16.msra.mxu0 %v1872
    %1975 = vmatprep.subr.bf16.mxu0 0
    %1976 = vmatpush1.bf16.msra.mxu0 %v1873
    %1977 = vmatprep.subr.bf16.mxu0 0
    %1978 = vmatpush1.bf16.msra.mxu0 %v1874
    %1979 = vmatprep.mubr.bf16.mxu0 %v1643
    %1980 = vmatmul.mubr.bf16.gmra.mrb[0].mxu0 %v1642
    %v1981 = vpop.f32.mrb[0].mxu0
    %v1982 = vadd.f32 %v1942, %v1981
    %v1983 = vpop.f32.mrb[0].mxu0
    %v1984 = vpop.f32.mrb[0].mxu0
    %v1985 = vpop.f32.mrb[0].mxu0
    %1986 = vdwg.mxu0
    %v1987 = vxor.u32 %v1982, 2147483648
    %v1988 = vmul.f32 %v1987, 1.442695
    %v1989 = vpow.pop %v1988
    %v1990 = vadd.f32 %v1989, 1.0
    %v1991 = vrcp.pop %v1990
    %v1992 = vmul.f32 1.0, %v1991
    %1993 = vst.msk [vmem:[#allocation16] sm:$0xff] %vm229, %v1992
    %vm1994 = vcmask 326656
    %1995 = vst.msk [vmem:[#allocation17] sm:$0xff] %vm1994, %v987
    // Predicated region
    $region98: #{tpu_custom_call.1} parent=1 // pred_check
      _
    $region99: #{tpu_custom_call.1} parent=1 // pred_check_branch
      %1997 = sbr.rel (0) target = $region101
    $region100: #{tpu_custom_call.1} parent=1 // pred_region
      %s1999 = ssub.s32 128, 128
      %2000 = vsyncadd [#allocation4], %s1999
      %s2002 = sshll.u32 [#allocation16], 4
      %s2003 = int_to_ptr.vmem [resolvable:$true] %s2002
      %2005 = dma.vmem_to_hbm [thread:$0]  %s2003, 128, %s16, [#allocation4]
    $region101: #{tpu_custom_call.1} parent=1 // pred_fallthru
      _
    // Predicated region
    $region102: #{tpu_custom_call.1} parent=1 // pred_check
      _
    $region103: #{tpu_custom_call.1} parent=1 // pred_check_branch
      %2007 = sbr.rel (0) target = $region105
    $region104: #{tpu_custom_call.1} parent=1 // pred_region
      %s2009 = ssub.s32 128, 128
      %2010 = vsyncadd [#allocation18], %s2009
      %s2012 = sshll.u32 [#allocation17], 4
      %s2013 = int_to_ptr.vmem [resolvable:$true] %s2012
      %2015 = dma.vmem_to_hbm [thread:$0]  %s2013, 128, %s17, [#allocation18]
    $region105: #{tpu_custom_call.1} parent=1 // pred_fallthru
      _
    // Predicated region
    $region106: #{tpu_custom_call.1} parent=1 // pred_check
      _
    $region107: #{tpu_custom_call.1} parent=1 // pred_check_branch
      %2017 = sbr.rel (0) target = $region109
    $region108: #{tpu_custom_call.1} parent=1 // pred_region
      %2018 = dma.done [#allocation4], 128
    $region109: #{tpu_custom_call.1} parent=1 // pred_fallthru
      _
    // Predicated region
    $region110: #{tpu_custom_call.1} parent=1 // pred_check
      _
    $region111: #{tpu_custom_call.1} parent=1 // pred_check_branch
      %2020 = sbr.rel (0) target = $region113
    $region112: #{tpu_custom_call.1} parent=1 // pred_region
      %2021 = dma.done [#allocation18], 128
    $region113: #{tpu_custom_call.1} parent=1 // pred_fallthru
      _
    %2022 = vsyncpa [#allocation3], 1
    %2023 = vsyncpa [#allocation6], 1
    %2024 = vsyncpa [#allocation9], 1
    %2025 = vsyncpa [#allocation12], 1
    %2026 = vsyncpa [#allocation15], 1
    %2027 = vsyncpa [#allocation4], 1
    %2028 = vsyncpa [#allocation18], 1

</llo_original>
